<compile_context>
chip_gen: v5e
topology: v5e:2x2
jax: 0.10.0
libtpu: 0.0.40
codegen_flags: <defaults>
</compile_context>

<pallas_src>
import functools

import numpy as np
import jax
import jax.numpy as jnp
from jax.experimental import pallas as pl
from jax.experimental.pallas import tpu as pltpu


def _round_up(x, m):
    return ((x + m - 1) // m) * m


# --------------------------------------------------------------------------
# Static packing layout (pure-Python metadata, closed over by the kernel).
# --------------------------------------------------------------------------
def _weight_block_dims(P, Channel, z_dim):
    PC = P * Channel
    # Fused weight blocks: name -> (fan_in, fan_out).
    return {
        "enc_in": (Channel, 64 * P),            # [fc1 | fc9]   (both consume x)
        "d2":     (64 * P, 32 * P),             # blockdiag(fc2, fc10)
        "d3":     (32 * P, 8 * P),              # blockdiag(fc3, fc11)
        "d4":     (8 * P, 2 * z_dim + 4 * P),   # blockdiag([fc4|fc5], fc12)
        "d5":     (4 * P + z_dim, 5 * P),       # blockdiag(fc13, fc6)
        "fc7":    (4 * P, 64 * P),
        "fc8":    (64 * P, PC),
        "expand": (P, PC),                      # 0/1: E[p, j] = [j // Channel == p]
        "summat": (PC, Channel),                # 0/1: S[j, c] = [j %  Channel == c]
    }


def _build_weight_layout(P, Channel, z_dim):
    """Group weight blocks by fan-in into <=3 row-height tiers (kills the
    previous pad-everything-to-max-fan-in row inflation)."""
    blocks = _weight_block_dims(P, Channel, z_dim)
    fins = [fin for fin, _ in blocks.values()]
    tier_l = _round_up(max(fins), 16)
    tier_m = _round_up(max([f for f in fins if f <= tier_l // 2] + [16]), 16)
    tier_s = _round_up(max([f for f in fins if f <= tier_m // 2] + [16]), 16)
    tiers = sorted({tier_s, tier_m, tier_l})

    cols = {t: 0 for t in tiers}
    wmeta = {}                                  # name -> (slab_idx, col_off, fin, fout)
    for name, (fin, fout) in blocks.items():
        rf = _round_up(fin, 16)
        t = next(t for t in tiers if t >= rf)
        wmeta[name] = (tiers.index(t), cols[t], fin, fout)
        cols[t] += _round_up(fout, 128)         # 128-lane-aligned column blocks
    slab_shapes = [(t, cols[t]) for t in tiers]
    return wmeta, slab_shapes


def _build_vec_layout(P, Channel, z_dim):
    PC = P * Channel
    widths = {}
    # BN affine params of the (fused) BatchNorm layers + the biases BN does
    # not cancel.
    for bn, w in (("bn19", 64 * P), ("bn210", 32 * P), ("bn311", 8 * P),
                  ("bn12", 4 * P), ("bn6", 4 * P), ("bn7", 64 * P)):
        widths[bn + "_g"] = w
        widths[bn + "_b"] = w
    widths["mulv_b"] = 2 * z_dim
    widths["fc13_b"] = P
    widths["fc8_b"] = PC
    vmeta = {name: (i, w) for i, (name, w) in enumerate(widths.items())}
    v_shape = (_round_up(len(widths), 8), _round_up(max(widths.values()), 128))
    return vmeta, v_shape


# --------------------------------------------------------------------------
# ONE-TIME host-side parameter packing (hoisted out of the per-call path).
# --------------------------------------------------------------------------
def pack_params(params, P, Channel, z_dim, matmul_dtype=jnp.bfloat16):
    """Pack all ~40 tiny parameter tensors into a few lane-dense slabs.
    Call once; pass the result to dvdiffusion_forward on every step."""
    PC = P * Channel
    wmeta, slab_shapes = _build_weight_layout(P, Channel, z_dim)
    vmeta, v_shape = _build_vec_layout(P, Channel, z_dim)

    p = {k: np.asarray(jax.device_get(v), dtype=np.float32)
         for k, v in params.items()}

    def blockdiag(a, b):
        out = np.zeros((a.shape[0] + b.shape[0], a.shape[1] + b.shape[1]),
                       np.float32)
        out[:a.shape[0], :a.shape[1]] = a
        out[a.shape[0]:, a.shape[1]:] = b
        return out

    # Baked 0/1 constant matrices for y_hat = ((a @ E) * em) @ S  (exact in bf16).
    expand = (np.arange(PC)[None, :] // Channel
              == np.arange(P)[:, None]).astype(np.float32)
    summat = (np.arange(PC)[:, None] % Channel
              == np.arange(Channel)[None, :]).astype(np.float32)

    wvals = {
        "enc_in": np.concatenate([p["fc1_w"], p["fc9_w"]], axis=1),
        "d2": blockdiag(p["fc2_w"], p["fc10_w"]),
        "d3": blockdiag(p["fc3_w"], p["fc11_w"]),
        "d4": blockdiag(np.concatenate([p["fc4_w"], p["fc5_w"]], axis=1),
                        p["fc12_w"]),
        "d5": blockdiag(p["fc13_w"], p["fc6_w"]),
        "fc7": p["fc7_w"],
        "fc8": p["fc8_w"],
        "expand": expand,
        "summat": summat,
    }
    w_slabs_np = [np.zeros(s, np.float32) for s in slab_shapes]
    for name, (si, coff, fin, fout) in wmeta.items():
        w_slabs_np[si][:fin, coff:coff + fout] = wvals[name]
    w_slabs = tuple(jnp.asarray(w, dtype=matmul_dtype) for w in w_slabs_np)

    vvals = {
        "bn19_g": np.concatenate([p["bn1_g"], p["bn9_g"]], axis=1),
        "bn19_b": np.concatenate([p["bn1_b"], p["bn9_b"]], axis=1),
        "bn210_g": np.concatenate([p["bn2_g"], p["bn10_g"]], axis=1),
        "bn210_b": np.concatenate([p["bn2_b"], p["bn10_b"]], axis=1),
        "bn311_g": np.concatenate([p["bn3_g"], p["bn11_g"]], axis=1),
        "bn311_b": np.concatenate([p["bn3_b"], p["bn11_b"]], axis=1),
        "bn12_g": p["bn12_g"], "bn12_b": p["bn12_b"],
        "bn6_g": p["bn6_g"], "bn6_b": p["bn6_b"],
        "bn7_g": p["bn7_g"], "bn7_b": p["bn7_b"],
        "mulv_b": np.concatenate([p["fc4_b"], p["fc5_b"]], axis=1),
        "fc13_b": p["fc13_b"],
        "fc8_b": p["fc8_b"],
    }
    v_slab_np = np.zeros(v_shape, np.float32)
    for name, (row, width) in vmeta.items():
        v_slab_np[row, :width] = vvals[name].reshape(-1)
    v_slab = jnp.asarray(v_slab_np)
    return w_slabs, v_slab


# --------------------------------------------------------------------------
# Kernel: whole TestDVD forward in VMEM, one lane-dense output store.
# --------------------------------------------------------------------------
def dvd_kernel(P, Channel, z_dim, n_w, wmeta, vmeta, matmul_dtype, *refs):
    io_ref = refs[0]
    w_refs = refs[1:1 + n_w]
    vec_ref = refs[1 + n_w]
    out_ref = refs[2 + n_w]

    B = io_ref.shape[0]
    PC = P * Channel

    x = io_ref[:, 0:Channel]
    eps = io_ref[:, Channel:Channel + z_dim]

    def weight(name):
        si, coff, fin, fout = wmeta[name]
        return w_refs[si][0:fin, coff:coff + fout]      # static slices

    def vec(name):
        row, width = vmeta[name]
        return vec_ref[row:row + 1, 0:width]

    def matmul(h, name):
        return jnp.dot(h.astype(matmul_dtype), weight(name),
                       preferred_element_type=jnp.float32)

    def bn_relu(h, name):
        # Training-mode BatchNorm1d (per-batch mean, biased var, eps=1e-5)
        # fused with relu; applied as h*scale + shift.  Variance clamped at 0
        # (E[h^2]-m^2 can go slightly negative from f32 cancellation).
        g = vec(name + "_g")
        be = vec(name + "_b")
        m = jnp.mean(h, axis=0, keepdims=True)
        var = jnp.maximum(jnp.mean(h * h, axis=0, keepdims=True) - m * m, 0.0)
        scale = g * jax.lax.rsqrt(var + 1e-5)
        shift = be - m * scale
        return jnp.maximum(h * scale + shift, 0.0)

    # Linear biases feeding training-mode BatchNorm are dropped throughout
    # (exactly cancelled by the batch-mean subtraction).
    h = bn_relu(matmul(x, "enc_in"), "bn19")         # fc1 || fc9         [B, 64P]
    h = bn_relu(matmul(h, "d2"), "bn210")            # fc2 || fc10        [B, 32P]
    h = bn_relu(matmul(h, "d3"), "bn311")            # fc3 || fc11        [B, 8P]

    h4 = matmul(h, "d4")                             # (fc4|fc5) || fc12  [B, 2z+4P]
    mulv = h4[:, 0:2 * z_dim] + vec("mulv_b")
    mu = mulv[:, 0:z_dim]
    log_var = mulv[:, z_dim:2 * z_dim]
    ha = bn_relu(h4[:, 2 * z_dim:2 * z_dim + 4 * P], "bn12")

    # reparameterize (noise supplied externally, like torch.randn)
    z = mu + eps * jnp.exp(0.5 * log_var)

    h5 = matmul(jnp.concatenate([ha, z], axis=1), "d5")   # fc13 || fc6   [B, 5P]
    logits = h5[:, 0:P] + vec("fc13_b")
    logits = logits - jnp.max(logits, axis=1, keepdims=True)
    e = jnp.exp(logits)
    a = e / jnp.sum(e, axis=1, keepdims=True)        # exact softmax

    hd = bn_relu(h5[:, P:5 * P], "bn6")
    hd = bn_relu(matmul(hd, "fc7"), "bn7")           # [B, 64P]
    em = jax.nn.sigmoid(matmul(hd, "fc8") + vec("fc8_b"))    # [B, PC]

    # y_hat[b,c] = sum_p a[b,p] * em[b, p*Channel + c] via two MXU matmuls
    # with host-baked 0/1 matrices:  y_hat = ((a @ E) * em) @ S
    a_exp = matmul(a, "expand")                      # [B, PC]
    y_hat = matmul(a_exp * em, "summat")             # [B, Channel]

    # single lane-dense store of all five outputs
    out_w = out_ref.shape[1]
    used = Channel + 2 * z_dim + P + PC
    parts = [y_hat, mu, log_var, a, em]
    if out_w > used:
        parts.append(jnp.zeros((B, out_w - used), jnp.float32))
    out_ref[...] = jnp.concatenate(parts, axis=1)


# --------------------------------------------------------------------------
# Per-call wrapper: one concat+pad for the io slab, one pallas_call, split.
# --------------------------------------------------------------------------
def dvdiffusion_forward(x, eps, w_slabs, v_slab, P, Channel, z_dim,
                        matmul_dtype=jnp.bfloat16):
    B = x.shape[0]
    PC = P * Channel
    wmeta, _ = _build_weight_layout(P, Channel, z_dim)
    vmeta, _ = _build_vec_layout(P, Channel, z_dim)
    n_w = len(w_slabs)

    in_used = Channel + z_dim
    in_pad = _round_up(in_used, 128)
    io = jnp.pad(jnp.concatenate([x.astype(jnp.float32),
                                  eps.astype(jnp.float32)], axis=1),
                 ((0, 0), (0, in_pad - in_used)))

    out_used = Channel + 2 * z_dim + P + PC
    out_pad = _round_up(out_used, 128)

    kernel = functools.partial(dvd_kernel, P, Channel, z_dim, n_w,
                               wmeta, vmeta, matmul_dtype)
    # TODO(synk): for B >> 8 add a batch grid axis (slabs pinned via constant
    # index_map, io/out tiled along batch, dimension_semantics=("parallel",))
    # with a two-phase batch-statistics pass to keep full-batch BN semantics.
    packed = pl.pallas_call(
        kernel,
        out_shape=jax.ShapeDtypeStruct((B, out_pad), jnp.float32),
        in_specs=[pl.BlockSpec(memory_space=pltpu.MemorySpace.VMEM)] * (2 + n_w),
        out_specs=pl.BlockSpec(memory_space=pltpu.MemorySpace.VMEM),
    )(io, *w_slabs, v_slab)

    o = 0
    y_hat = packed[:, o:o + Channel]; o += Channel
    mu = packed[:, o:o + z_dim]; o += z_dim
    log_var = packed[:, o:o + z_dim]; o += z_dim
    a = packed[:, o:o + P]; o += P
    em_tensor = packed[:, o:o + PC].reshape(B, P, Channel)
    return y_hat, mu, log_var, a, em_tensor


# --------------------------------------------------------------------------
# Pure-JAX reference (same bf16 MXU-operand rounding) for a sanity check.
# --------------------------------------------------------------------------
def dvd_reference(x, eps, params, P, Channel, z_dim, matmul_dtype=jnp.bfloat16):
    def lin(h, name):
        w = params[name + "_w"].astype(matmul_dtype)
        return jnp.dot(h.astype(matmul_dtype), w,
                       preferred_element_type=jnp.float32) + params[name + "_b"]

    def bn(h, name):
        m = jnp.mean(h, axis=0, keepdims=True)
        v = jnp.mean((h - m) ** 2, axis=0, keepdims=True)
        return (h - m) * jax.lax.rsqrt(v + 1e-5) * params[name + "_g"] \
            + params[name + "_b"]

    relu = lambda h: jnp.maximum(h, 0.0)

    hz = relu(bn(lin(x, "fc1"), "bn1"))
    hz = relu(bn(lin(hz, "fc2"), "bn2"))
    hz = relu(bn(lin(hz, "fc3"), "bn3"))
    mu, log_var = lin(hz, "fc4"), lin(hz, "fc5")

    ha = relu(bn(lin(x, "fc9"), "bn9"))
    ha = relu(bn(lin(ha, "fc10"), "bn10"))
    ha = relu(bn(lin(ha, "fc11"), "bn11"))
    ha = relu(bn(lin(ha, "fc12"), "bn12"))
    a = jax.nn.softmax(lin(ha, "fc13"), axis=1)

    z = mu + eps * jnp.exp(0.5 * log_var)
    hd = relu(bn(lin(z, "fc6"), "bn6"))
    hd = relu(bn(lin(hd, "fc7"), "bn7"))
    em = jax.nn.sigmoid(lin(hd, "fc8"))

    em_tensor = em.reshape(x.shape[0], P, Channel)
    y_hat = jnp.einsum("bp,bpc->bc", a, em_tensor)
    return y_hat, mu, log_var, a, em_tensor


def init_params(key, P, Channel, z_dim):
    """PyTorch-default-style init (Linear: U(+-1/sqrt(fan_in)); BN: gamma=1, beta=0)."""
    lin_dims = {
        "fc1": (Channel, 32 * P), "fc2": (32 * P, 16 * P), "fc3": (16 * P, 4 * P),
        "fc4": (4 * P, z_dim), "fc5": (4 * P, z_dim),
        "fc9": (Channel, 32 * P), "fc10": (32 * P, 16 * P), "fc11": (16 * P, 4 * P),
        "fc12": (4 * P, 4 * P), "fc13": (4 * P, P),
        "fc6": (z_dim, 4 * P), "fc7": (4 * P, 64 * P), "fc8": (64 * P, Channel * P),
    }
    bn_dims = {
        "bn1": 32 * P, "bn2": 16 * P, "bn3": 4 * P,
        "bn9": 32 * P, "bn10": 16 * P, "bn11": 4 * P, "bn12": 4 * P,
        "bn6": 4 * P, "bn7": 64 * P,
    }
    params = {}
    for name, (fin, fout) in lin_dims.items():
        key, kw, kb = jax.random.split(key, 3)
        bound = 1.0 / (fin ** 0.5)
        params[name + "_w"] = jax.random.uniform(kw, (fin, fout), jnp.float32, -bound, bound)
        params[name + "_b"] = jax.random.uniform(kb, (1, fout), jnp.float32, -bound, bound)
    for name, d in bn_dims.items():
        params[name + "_g"] = jnp.ones((1, d), jnp.float32)
        params[name + "_b"] = jnp.zeros((1, d), jnp.float32)
    return params


if __name__ == "__main__":
    # P = abundance_dim, Channel = #bands, z_dim = abundance_dim (as in
    # DVDiffusion.__init__); small batch.
    P, Channel, z_dim = 4, 16, 4
    B = 8

    key = jax.random.PRNGKey(0)
    key, kx, keps, kp = jax.random.split(key, 4)
    x = jax.random.normal(kx, (B, Channel), dtype=jnp.float32)     # y_unsupervised
    eps = jax.random.normal(keps, (B, z_dim), dtype=jnp.float32)   # torch.randn noise
    params = init_params(kp, P, Channel, z_dim)

    # One-time parameter packing (hoisted out of the per-call path).
    w_slabs, v_slab = pack_params(params, P, Channel, z_dim)

    fwd = jax.jit(functools.partial(dvdiffusion_forward,
                                    P=P, Channel=Channel, z_dim=z_dim))
    outs = jax.block_until_ready(fwd(x, eps, w_slabs, v_slab))
    y_hat, mu, log_var, a, em_tensor = outs

    assert y_hat.shape == (B, Channel)
    assert mu.shape == (B, z_dim) and log_var.shape == (B, z_dim)
    assert a.shape == (B, P)
    assert em_tensor.shape == (B, P, Channel)
    for o in outs:
        assert bool(jnp.all(jnp.isfinite(o)))
    # exact softmax: rows sum to 1
    assert bool(jnp.allclose(jnp.sum(a, axis=1), 1.0, atol=1e-4))

    # sanity vs. pure-JAX reference with the same bf16 MXU-operand rounding
    refs = dvd_reference(x, eps, params, P, Channel, z_dim)
    for o, r in zip(outs, refs):
        assert o.shape == r.shape
        assert bool(jnp.allclose(o, r, rtol=2e-2, atol=2e-2)), (
            float(jnp.max(jnp.abs(o - r))))

    print("KERNEL_OK")
</pallas_src>

<mosaic_0001>
module attributes {stable_mosaic.version = 11 : i64} {
  func.func @dvd_kernel(%arg0: memref<8x128xf32, #tpu.memory_space<vmem>>, %arg1: memref<64x1024xbf16, #tpu.memory_space<vmem>>, %arg2: memref<128x128xbf16, #tpu.memory_space<vmem>>, %arg3: memref<256x256xbf16, #tpu.memory_space<vmem>>, %arg4: memref<16x256xf32, #tpu.memory_space<vmem>>, %arg5: memref<8x128xf32, #tpu.memory_space<vmem>>) attributes {dimension_semantics = [], scalar_prefetch = 0 : i64, scratch_operands = 0 : i64, tpu.core_type = #tpu.core_type<tc>} {
    %c0 = arith.constant 0 : index
    %c0_0 = arith.constant 0 : index
    %0 = vector.load %arg0[%c0, %c0_0] : memref<8x128xf32, #tpu.memory_space<vmem>>, vector<8x16xf32>
    %c0_1 = arith.constant 0 : index
    %c16 = arith.constant 16 : index
    %1 = vector.load %arg0[%c0_1, %c16] : memref<8x128xf32, #tpu.memory_space<vmem>>, vector<8x4xf32>
    %2 = arith.truncf %0 : vector<8x16xf32> to vector<8x16xbf16>
    %c0_2 = arith.constant 0 : index
    %c0_3 = arith.constant 0 : index
    %3 = vector.load %arg1[%c0_2, %c0_3] : memref<64x1024xbf16, #tpu.memory_space<vmem>>, vector<16x256xbf16>
    %cst = arith.constant dense<0.000000e+00> : vector<8x256xf32>
    %4 = tpu.matmul %2, %3, %cst {dimension_numbers = #tpu.dot_dimension_numbers<[1], [0], [0], [1], [0, 0, 1, 1], [], []>} : vector<8x16xbf16>, vector<16x256xbf16>, vector<8x256xf32> -> vector<8x256xf32>
    %c0_4 = arith.constant 0 : index
    %c0_5 = arith.constant 0 : index
    %5 = vector.load %arg4[%c0_4, %c0_5] : memref<16x256xf32, #tpu.memory_space<vmem>>, vector<1x256xf32>
    %c1 = arith.constant 1 : index
    %c0_6 = arith.constant 0 : index
    %6 = vector.load %arg4[%c1, %c0_6] : memref<16x256xf32, #tpu.memory_space<vmem>>, vector<1x256xf32>
    %cst_7 = arith.constant dense<0.000000e+00> : vector<256xf32>
    %7 = vector.multi_reduction <add>, %4, %cst_7 [0] : vector<8x256xf32> to vector<256xf32>
    %8 = vector.shape_cast %7 : vector<256xf32> to vector<1x256xf32>
    %cst_8 = arith.constant 8.000000e+00 : f32
    %9 = vector.broadcast %cst_8 : f32 to vector<1x256xf32>
    %10 = arith.divf %8, %9 : vector<1x256xf32>
    %11 = arith.mulf %4, %4 : vector<8x256xf32>
    %cst_9 = arith.constant dense<0.000000e+00> : vector<256xf32>
    %12 = vector.multi_reduction <add>, %11, %cst_9 [0] : vector<8x256xf32> to vector<256xf32>
    %13 = vector.shape_cast %12 : vector<256xf32> to vector<1x256xf32>
    %cst_10 = arith.constant 8.000000e+00 : f32
    %14 = vector.broadcast %cst_10 : f32 to vector<1x256xf32>
    %15 = arith.divf %13, %14 : vector<1x256xf32>
    %16 = arith.mulf %10, %10 : vector<1x256xf32>
    %17 = arith.subf %15, %16 : vector<1x256xf32>
    %cst_11 = arith.constant 0.000000e+00 : f32
    %18 = vector.broadcast %cst_11 : f32 to vector<1x256xf32>
    %19 = arith.maximumf %17, %18 : vector<1x256xf32>
    %cst_12 = arith.constant 9.99999974E-6 : f32
    %20 = vector.broadcast %cst_12 : f32 to vector<1x256xf32>
    %21 = arith.addf %19, %20 : vector<1x256xf32>
    %22 = math.rsqrt %21 : vector<1x256xf32>
    %23 = arith.mulf %5, %22 : vector<1x256xf32>
    %24 = arith.mulf %10, %23 : vector<1x256xf32>
    %25 = arith.subf %6, %24 : vector<1x256xf32>
    %26 = vector.broadcast %23 : vector<1x256xf32> to vector<8x256xf32>
    %27 = arith.mulf %4, %26 : vector<8x256xf32>
    %28 = vector.broadcast %25 : vector<1x256xf32> to vector<8x256xf32>
    %29 = arith.addf %27, %28 : vector<8x256xf32>
    %cst_13 = arith.constant 0.000000e+00 : f32
    %30 = vector.broadcast %cst_13 : f32 to vector<8x256xf32>
    %31 = arith.maximumf %29, %30 : vector<8x256xf32>
    %32 = arith.truncf %31 : vector<8x256xf32> to vector<8x256xbf16>
    %c0_14 = arith.constant 0 : index
    %c0_15 = arith.constant 0 : index
    %33 = vector.load %arg3[%c0_14, %c0_15] : memref<256x256xbf16, #tpu.memory_space<vmem>>, vector<256x128xbf16>
    %cst_16 = arith.constant dense<0.000000e+00> : vector<8x128xf32>
    %34 = tpu.matmul %32, %33, %cst_16 {dimension_numbers = #tpu.dot_dimension_numbers<[1], [0], [0], [1], [0, 0, 1, 1], [], []>} : vector<8x256xbf16>, vector<256x128xbf16>, vector<8x128xf32> -> vector<8x128xf32>
    %c2 = arith.constant 2 : index
    %c0_17 = arith.constant 0 : index
    %35 = vector.load %arg4[%c2, %c0_17] : memref<16x256xf32, #tpu.memory_space<vmem>>, vector<1x128xf32>
    %c3 = arith.constant 3 : index
    %c0_18 = arith.constant 0 : index
    %36 = vector.load %arg4[%c3, %c0_18] : memref<16x256xf32, #tpu.memory_space<vmem>>, vector<1x128xf32>
    %cst_19 = arith.constant dense<0.000000e+00> : vector<128xf32>
    %37 = vector.multi_reduction <add>, %34, %cst_19 [0] : vector<8x128xf32> to vector<128xf32>
    %38 = vector.shape_cast %37 : vector<128xf32> to vector<1x128xf32>
    %cst_20 = arith.constant 8.000000e+00 : f32
    %39 = vector.broadcast %cst_20 : f32 to vector<1x128xf32>
    %40 = arith.divf %38, %39 : vector<1x128xf32>
    %41 = arith.mulf %34, %34 : vector<8x128xf32>
    %cst_21 = arith.constant dense<0.000000e+00> : vector<128xf32>
    %42 = vector.multi_reduction <add>, %41, %cst_21 [0] : vector<8x128xf32> to vector<128xf32>
    %43 = vector.shape_cast %42 : vector<128xf32> to vector<1x128xf32>
    %cst_22 = arith.constant 8.000000e+00 : f32
    %44 = vector.broadcast %cst_22 : f32 to vector<1x128xf32>
    %45 = arith.divf %43, %44 : vector<1x128xf32>
    %46 = arith.mulf %40, %40 : vector<1x128xf32>
    %47 = arith.subf %45, %46 : vector<1x128xf32>
    %cst_23 = arith.constant 0.000000e+00 : f32
    %48 = vector.broadcast %cst_23 : f32 to vector<1x128xf32>
    %49 = arith.maximumf %47, %48 : vector<1x128xf32>
    %cst_24 = arith.constant 9.99999974E-6 : f32
    %50 = vector.broadcast %cst_24 : f32 to vector<1x128xf32>
    %51 = arith.addf %49, %50 : vector<1x128xf32>
    %52 = math.rsqrt %51 : vector<1x128xf32>
    %53 = arith.mulf %35, %52 : vector<1x128xf32>
    %54 = arith.mulf %40, %53 : vector<1x128xf32>
    %55 = arith.subf %36, %54 : vector<1x128xf32>
    %56 = vector.broadcast %53 : vector<1x128xf32> to vector<8x128xf32>
    %57 = arith.mulf %34, %56 : vector<8x128xf32>
    %58 = vector.broadcast %55 : vector<1x128xf32> to vector<8x128xf32>
    %59 = arith.addf %57, %58 : vector<8x128xf32>
    %cst_25 = arith.constant 0.000000e+00 : f32
    %60 = vector.broadcast %cst_25 : f32 to vector<8x128xf32>
    %61 = arith.maximumf %59, %60 : vector<8x128xf32>
    %62 = arith.truncf %61 : vector<8x128xf32> to vector<8x128xbf16>
    %c0_26 = arith.constant 0 : index
    %c0_27 = arith.constant 0 : index
    %63 = vector.load %arg2[%c0_26, %c0_27] : memref<128x128xbf16, #tpu.memory_space<vmem>>, vector<128x32xbf16>
    %cst_28 = arith.constant dense<0.000000e+00> : vector<8x32xf32>
    %64 = tpu.matmul %62, %63, %cst_28 {dimension_numbers = #tpu.dot_dimension_numbers<[1], [0], [0], [1], [0, 0, 1, 1], [], []>} : vector<8x128xbf16>, vector<128x32xbf16>, vector<8x32xf32> -> vector<8x32xf32>
    %c4 = arith.constant 4 : index
    %c0_29 = arith.constant 0 : index
    %65 = vector.load %arg4[%c4, %c0_29] : memref<16x256xf32, #tpu.memory_space<vmem>>, vector<1x32xf32>
    %c5 = arith.constant 5 : index
    %c0_30 = arith.constant 0 : index
    %66 = vector.load %arg4[%c5, %c0_30] : memref<16x256xf32, #tpu.memory_space<vmem>>, vector<1x32xf32>
    %cst_31 = arith.constant dense<0.000000e+00> : vector<32xf32>
    %67 = vector.multi_reduction <add>, %64, %cst_31 [0] : vector<8x32xf32> to vector<32xf32>
    %68 = vector.shape_cast %67 : vector<32xf32> to vector<1x32xf32>
    %cst_32 = arith.constant 8.000000e+00 : f32
    %69 = vector.broadcast %cst_32 : f32 to vector<1x32xf32>
    %70 = arith.divf %68, %69 : vector<1x32xf32>
    %71 = arith.mulf %64, %64 : vector<8x32xf32>
    %cst_33 = arith.constant dense<0.000000e+00> : vector<32xf32>
    %72 = vector.multi_reduction <add>, %71, %cst_33 [0] : vector<8x32xf32> to vector<32xf32>
    %73 = vector.shape_cast %72 : vector<32xf32> to vector<1x32xf32>
    %cst_34 = arith.constant 8.000000e+00 : f32
    %74 = vector.broadcast %cst_34 : f32 to vector<1x32xf32>
    %75 = arith.divf %73, %74 : vector<1x32xf32>
    %76 = arith.mulf %70, %70 : vector<1x32xf32>
    %77 = arith.subf %75, %76 : vector<1x32xf32>
    %cst_35 = arith.constant 0.000000e+00 : f32
    %78 = vector.broadcast %cst_35 : f32 to vector<1x32xf32>
    %79 = arith.maximumf %77, %78 : vector<1x32xf32>
    %cst_36 = arith.constant 9.99999974E-6 : f32
    %80 = vector.broadcast %cst_36 : f32 to vector<1x32xf32>
    %81 = arith.addf %79, %80 : vector<1x32xf32>
    %82 = math.rsqrt %81 : vector<1x32xf32>
    %83 = arith.mulf %65, %82 : vector<1x32xf32>
    %84 = arith.mulf %70, %83 : vector<1x32xf32>
    %85 = arith.subf %66, %84 : vector<1x32xf32>
    %86 = vector.broadcast %83 : vector<1x32xf32> to vector<8x32xf32>
    %87 = arith.mulf %64, %86 : vector<8x32xf32>
    %88 = vector.broadcast %85 : vector<1x32xf32> to vector<8x32xf32>
    %89 = arith.addf %87, %88 : vector<8x32xf32>
    %cst_37 = arith.constant 0.000000e+00 : f32
    %90 = vector.broadcast %cst_37 : f32 to vector<8x32xf32>
    %91 = arith.maximumf %89, %90 : vector<8x32xf32>
    %92 = arith.truncf %91 : vector<8x32xf32> to vector<8x32xbf16>
    %c0_38 = arith.constant 0 : index
    %c256 = arith.constant 256 : index
    %93 = vector.load %arg1[%c0_38, %c256] : memref<64x1024xbf16, #tpu.memory_space<vmem>>, vector<32x24xbf16>
    %cst_39 = arith.constant dense<0.000000e+00> : vector<8x24xf32>
    %94 = tpu.matmul %92, %93, %cst_39 {dimension_numbers = #tpu.dot_dimension_numbers<[1], [0], [0], [1], [0, 0, 1, 1], [], []>} : vector<8x32xbf16>, vector<32x24xbf16>, vector<8x24xf32> -> vector<8x24xf32>
    %95 = vector.extract_strided_slice %94 {offsets = [0, 0], sizes = [8, 8], strides = [1, 1]} : vector<8x24xf32> to vector<8x8xf32>
    %c12 = arith.constant 12 : index
    %c0_40 = arith.constant 0 : index
    %96 = vector.load %arg4[%c12, %c0_40] : memref<16x256xf32, #tpu.memory_space<vmem>>, vector<1x8xf32>
    %97 = vector.broadcast %96 : vector<1x8xf32> to vector<8x8xf32>
    %98 = arith.addf %95, %97 : vector<8x8xf32>
    %99 = vector.extract_strided_slice %98 {offsets = [0, 0], sizes = [8, 4], strides = [1, 1]} : vector<8x8xf32> to vector<8x4xf32>
    %100 = vector.extract_strided_slice %98 {offsets = [0, 4], sizes = [8, 4], strides = [1, 1]} : vector<8x8xf32> to vector<8x4xf32>
    %101 = vector.extract_strided_slice %94 {offsets = [0, 8], sizes = [8, 16], strides = [1, 1]} : vector<8x24xf32> to vector<8x16xf32>
    %c6 = arith.constant 6 : index
    %c0_41 = arith.constant 0 : index
    %102 = vector.load %arg4[%c6, %c0_41] : memref<16x256xf32, #tpu.memory_space<vmem>>, vector<1x16xf32>
    %c7 = arith.constant 7 : index
    %c0_42 = arith.constant 0 : index
    %103 = vector.load %arg4[%c7, %c0_42] : memref<16x256xf32, #tpu.memory_space<vmem>>, vector<1x16xf32>
    %cst_43 = arith.constant dense<0.000000e+00> : vector<16xf32>
    %104 = vector.multi_reduction <add>, %101, %cst_43 [0] : vector<8x16xf32> to vector<16xf32>
    %105 = vector.shape_cast %104 : vector<16xf32> to vector<1x16xf32>
    %cst_44 = arith.constant 8.000000e+00 : f32
    %106 = vector.broadcast %cst_44 : f32 to vector<1x16xf32>
    %107 = arith.divf %105, %106 : vector<1x16xf32>
    %108 = arith.mulf %101, %101 : vector<8x16xf32>
    %cst_45 = arith.constant dense<0.000000e+00> : vector<16xf32>
    %109 = vector.multi_reduction <add>, %108, %cst_45 [0] : vector<8x16xf32> to vector<16xf32>
    %110 = vector.shape_cast %109 : vector<16xf32> to vector<1x16xf32>
    %cst_46 = arith.constant 8.000000e+00 : f32
    %111 = vector.broadcast %cst_46 : f32 to vector<1x16xf32>
    %112 = arith.divf %110, %111 : vector<1x16xf32>
    %113 = arith.mulf %107, %107 : vector<1x16xf32>
    %114 = arith.subf %112, %113 : vector<1x16xf32>
    %cst_47 = arith.constant 0.000000e+00 : f32
    %115 = vector.broadcast %cst_47 : f32 to vector<1x16xf32>
    %116 = arith.maximumf %114, %115 : vector<1x16xf32>
    %cst_48 = arith.constant 9.99999974E-6 : f32
    %117 = vector.broadcast %cst_48 : f32 to vector<1x16xf32>
    %118 = arith.addf %116, %117 : vector<1x16xf32>
    %119 = math.rsqrt %118 : vector<1x16xf32>
    %120 = arith.mulf %102, %119 : vector<1x16xf32>
    %121 = arith.mulf %107, %120 : vector<1x16xf32>
    %122 = arith.subf %103, %121 : vector<1x16xf32>
    %123 = vector.broadcast %120 : vector<1x16xf32> to vector<8x16xf32>
    %124 = arith.mulf %101, %123 : vector<8x16xf32>
    %125 = vector.broadcast %122 : vector<1x16xf32> to vector<8x16xf32>
    %126 = arith.addf %124, %125 : vector<8x16xf32>
    %cst_49 = arith.constant 0.000000e+00 : f32
    %127 = vector.broadcast %cst_49 : f32 to vector<8x16xf32>
    %128 = arith.maximumf %126, %127 : vector<8x16xf32>
    %cst_50 = arith.constant 5.000000e-01 : f32
    %129 = vector.broadcast %cst_50 : f32 to vector<8x4xf32>
    %130 = arith.mulf %129, %100 : vector<8x4xf32>
    %131 = math.exp %130 : vector<8x4xf32>
    %132 = arith.mulf %1, %131 : vector<8x4xf32>
    %133 = arith.addf %99, %132 : vector<8x4xf32>
    %134 = tpu.concatenate %128, %133 in 1 : vector<8x16xf32>, vector<8x4xf32> -> vector<8x20xf32>
    %135 = arith.truncf %134 : vector<8x20xf32> to vector<8x20xbf16>
    %c0_51 = arith.constant 0 : index
    %c384 = arith.constant 384 : index
    %136 = vector.load %arg1[%c0_51, %c384] : memref<64x1024xbf16, #tpu.memory_space<vmem>>, vector<20x20xbf16>
    %cst_52 = arith.constant dense<0.000000e+00> : vector<8x20xf32>
    %137 = tpu.matmul %135, %136, %cst_52 {dimension_numbers = #tpu.dot_dimension_numbers<[1], [0], [0], [1], [0, 0, 1, 1], [], []>} : vector<8x20xbf16>, vector<20x20xbf16>, vector<8x20xf32> -> vector<8x20xf32>
    %138 = vector.extract_strided_slice %137 {offsets = [0, 0], sizes = [8, 4], strides = [1, 1]} : vector<8x20xf32> to vector<8x4xf32>
    %c13 = arith.constant 13 : index
    %c0_53 = arith.constant 0 : index
    %139 = vector.load %arg4[%c13, %c0_53] : memref<16x256xf32, #tpu.memory_space<vmem>>, vector<1x4xf32>
    %140 = vector.broadcast %139 : vector<1x4xf32> to vector<8x4xf32>
    %141 = arith.addf %138, %140 : vector<8x4xf32>
    %cst_54 = arith.constant dense<0xFF800000> : vector<8xf32>
    %142 = vector.multi_reduction <maximumf>, %141, %cst_54 [1] : vector<8x4xf32> to vector<8xf32>
    %143 = vector.shape_cast %142 : vector<8xf32> to vector<8x1xf32>
    %144 = vector.broadcast %143 : vector<8x1xf32> to vector<8x4xf32>
    %145 = arith.subf %141, %144 : vector<8x4xf32>
    %146 = math.exp %145 : vector<8x4xf32>
    %cst_55 = arith.constant dense<0.000000e+00> : vector<8xf32>
    %147 = vector.multi_reduction <add>, %146, %cst_55 [1] : vector<8x4xf32> to vector<8xf32>
    %148 = vector.shape_cast %147 : vector<8xf32> to vector<8x1xf32>
    %149 = vector.broadcast %148 : vector<8x1xf32> to vector<8x4xf32>
    %150 = arith.divf %146, %149 : vector<8x4xf32>
    %151 = vector.extract_strided_slice %137 {offsets = [0, 4], sizes = [8, 16], strides = [1, 1]} : vector<8x20xf32> to vector<8x16xf32>
    %c8 = arith.constant 8 : index
    %c0_56 = arith.constant 0 : index
    %152 = vector.load %arg4[%c8, %c0_56] : memref<16x256xf32, #tpu.memory_space<vmem>>, vector<1x16xf32>
    %c9 = arith.constant 9 : index
    %c0_57 = arith.constant 0 : index
    %153 = vector.load %arg4[%c9, %c0_57] : memref<16x256xf32, #tpu.memory_space<vmem>>, vector<1x16xf32>
    %cst_58 = arith.constant dense<0.000000e+00> : vector<16xf32>
    %154 = vector.multi_reduction <add>, %151, %cst_58 [0] : vector<8x16xf32> to vector<16xf32>
    %155 = vector.shape_cast %154 : vector<16xf32> to vector<1x16xf32>
    %cst_59 = arith.constant 8.000000e+00 : f32
    %156 = vector.broadcast %cst_59 : f32 to vector<1x16xf32>
    %157 = arith.divf %155, %156 : vector<1x16xf32>
    %158 = arith.mulf %151, %151 : vector<8x16xf32>
    %cst_60 = arith.constant dense<0.000000e+00> : vector<16xf32>
    %159 = vector.multi_reduction <add>, %158, %cst_60 [0] : vector<8x16xf32> to vector<16xf32>
    %160 = vector.shape_cast %159 : vector<16xf32> to vector<1x16xf32>
    %cst_61 = arith.constant 8.000000e+00 : f32
    %161 = vector.broadcast %cst_61 : f32 to vector<1x16xf32>
    %162 = arith.divf %160, %161 : vector<1x16xf32>
    %163 = arith.mulf %157, %157 : vector<1x16xf32>
    %164 = arith.subf %162, %163 : vector<1x16xf32>
    %cst_62 = arith.constant 0.000000e+00 : f32
    %165 = vector.broadcast %cst_62 : f32 to vector<1x16xf32>
    %166 = arith.maximumf %164, %165 : vector<1x16xf32>
    %cst_63 = arith.constant 9.99999974E-6 : f32
    %167 = vector.broadcast %cst_63 : f32 to vector<1x16xf32>
    %168 = arith.addf %166, %167 : vector<1x16xf32>
    %169 = math.rsqrt %168 : vector<1x16xf32>
    %170 = arith.mulf %152, %169 : vector<1x16xf32>
    %171 = arith.mulf %157, %170 : vector<1x16xf32>
    %172 = arith.subf %153, %171 : vector<1x16xf32>
    %173 = vector.broadcast %170 : vector<1x16xf32> to vector<8x16xf32>
    %174 = arith.mulf %151, %173 : vector<8x16xf32>
    %175 = vector.broadcast %172 : vector<1x16xf32> to vector<8x16xf32>
    %176 = arith.addf %174, %175 : vector<8x16xf32>
    %cst_64 = arith.constant 0.000000e+00 : f32
    %177 = vector.broadcast %cst_64 : f32 to vector<8x16xf32>
    %178 = arith.maximumf %176, %177 : vector<8x16xf32>
    %179 = arith.truncf %178 : vector<8x16xf32> to vector<8x16xbf16>
    %c0_65 = arith.constant 0 : index
    %c512 = arith.constant 512 : index
    %180 = vector.load %arg1[%c0_65, %c512] : memref<64x1024xbf16, #tpu.memory_space<vmem>>, vector<16x256xbf16>
    %cst_66 = arith.constant dense<0.000000e+00> : vector<8x256xf32>
    %181 = tpu.matmul %179, %180, %cst_66 {dimension_numbers = #tpu.dot_dimension_numbers<[1], [0], [0], [1], [0, 0, 1, 1], [], []>} : vector<8x16xbf16>, vector<16x256xbf16>, vector<8x256xf32> -> vector<8x256xf32>
    %c10 = arith.constant 10 : index
    %c0_67 = arith.constant 0 : index
    %182 = vector.load %arg4[%c10, %c0_67] : memref<16x256xf32, #tpu.memory_space<vmem>>, vector<1x256xf32>
    %c11 = arith.constant 11 : index
    %c0_68 = arith.constant 0 : index
    %183 = vector.load %arg4[%c11, %c0_68] : memref<16x256xf32, #tpu.memory_space<vmem>>, vector<1x256xf32>
    %cst_69 = arith.constant dense<0.000000e+00> : vector<256xf32>
    %184 = vector.multi_reduction <add>, %181, %cst_69 [0] : vector<8x256xf32> to vector<256xf32>
    %185 = vector.shape_cast %184 : vector<256xf32> to vector<1x256xf32>
    %cst_70 = arith.constant 8.000000e+00 : f32
    %186 = vector.broadcast %cst_70 : f32 to vector<1x256xf32>
    %187 = arith.divf %185, %186 : vector<1x256xf32>
    %188 = arith.mulf %181, %181 : vector<8x256xf32>
    %cst_71 = arith.constant dense<0.000000e+00> : vector<256xf32>
    %189 = vector.multi_reduction <add>, %188, %cst_71 [0] : vector<8x256xf32> to vector<256xf32>
    %190 = vector.shape_cast %189 : vector<256xf32> to vector<1x256xf32>
    %cst_72 = arith.constant 8.000000e+00 : f32
    %191 = vector.broadcast %cst_72 : f32 to vector<1x256xf32>
    %192 = arith.divf %190, %191 : vector<1x256xf32>
    %193 = arith.mulf %187, %187 : vector<1x256xf32>
    %194 = arith.subf %192, %193 : vector<1x256xf32>
    %cst_73 = arith.constant 0.000000e+00 : f32
    %195 = vector.broadcast %cst_73 : f32 to vector<1x256xf32>
    %196 = arith.maximumf %194, %195 : vector<1x256xf32>
    %cst_74 = arith.constant 9.99999974E-6 : f32
    %197 = vector.broadcast %cst_74 : f32 to vector<1x256xf32>
    %198 = arith.addf %196, %197 : vector<1x256xf32>
    %199 = math.rsqrt %198 : vector<1x256xf32>
    %200 = arith.mulf %182, %199 : vector<1x256xf32>
    %201 = arith.mulf %187, %200 : vector<1x256xf32>
    %202 = arith.subf %183, %201 : vector<1x256xf32>
    %203 = vector.broadcast %200 : vector<1x256xf32> to vector<8x256xf32>
    %204 = arith.mulf %181, %203 : vector<8x256xf32>
    %205 = vector.broadcast %202 : vector<1x256xf32> to vector<8x256xf32>
    %206 = arith.addf %204, %205 : vector<8x256xf32>
    %cst_75 = arith.constant 0.000000e+00 : f32
    %207 = vector.broadcast %cst_75 : f32 to vector<8x256xf32>
    %208 = arith.maximumf %206, %207 : vector<8x256xf32>
    %209 = arith.truncf %208 : vector<8x256xf32> to vector<8x256xbf16>
    %c0_76 = arith.constant 0 : index
    %c128 = arith.constant 128 : index
    %210 = vector.load %arg3[%c0_76, %c128] : memref<256x256xbf16, #tpu.memory_space<vmem>>, vector<256x64xbf16>
    %cst_77 = arith.constant dense<0.000000e+00> : vector<8x64xf32>
    %211 = tpu.matmul %209, %210, %cst_77 {dimension_numbers = #tpu.dot_dimension_numbers<[1], [0], [0], [1], [0, 0, 1, 1], [], []>} : vector<8x256xbf16>, vector<256x64xbf16>, vector<8x64xf32> -> vector<8x64xf32>
    %c14 = arith.constant 14 : index
    %c0_78 = arith.constant 0 : index
    %212 = vector.load %arg4[%c14, %c0_78] : memref<16x256xf32, #tpu.memory_space<vmem>>, vector<1x64xf32>
    %213 = vector.broadcast %212 : vector<1x64xf32> to vector<8x64xf32>
    %214 = arith.addf %211, %213 : vector<8x64xf32>
    %215 = arith.negf %214 : vector<8x64xf32>
    %216 = math.exp %215 : vector<8x64xf32>
    %cst_79 = arith.constant 1.000000e+00 : f32
    %217 = vector.broadcast %cst_79 : f32 to vector<8x64xf32>
    %218 = arith.addf %217, %216 : vector<8x64xf32>
    %219 = arith.divf %217, %218 : vector<8x64xf32>
    %220 = arith.truncf %150 : vector<8x4xf32> to vector<8x4xbf16>
    %c0_80 = arith.constant 0 : index
    %c768 = arith.constant 768 : index
    %221 = vector.load %arg1[%c0_80, %c768] : memref<64x1024xbf16, #tpu.memory_space<vmem>>, vector<4x64xbf16>
    %cst_81 = arith.constant dense<0.000000e+00> : vector<8x64xf32>
    %222 = tpu.matmul %220, %221, %cst_81 {dimension_numbers = #tpu.dot_dimension_numbers<[1], [0], [0], [1], [0, 0, 1, 1], [], []>} : vector<8x4xbf16>, vector<4x64xbf16>, vector<8x64xf32> -> vector<8x64xf32>
    %223 = arith.mulf %222, %219 : vector<8x64xf32>
    %224 = arith.truncf %223 : vector<8x64xf32> to vector<8x64xbf16>
    %c0_82 = arith.constant 0 : index
    %c896 = arith.constant 896 : index
    %225 = vector.load %arg1[%c0_82, %c896] : memref<64x1024xbf16, #tpu.memory_space<vmem>>, vector<64x16xbf16>
    %cst_83 = arith.constant dense<0.000000e+00> : vector<8x16xf32>
    %226 = tpu.matmul %224, %225, %cst_83 {dimension_numbers = #tpu.dot_dimension_numbers<[1], [0], [0], [1], [0, 0, 1, 1], [], []>} : vector<8x64xbf16>, vector<64x16xbf16>, vector<8x16xf32> -> vector<8x16xf32>
    %cst_84 = arith.constant 0.000000e+00 : f32
    %227 = vector.broadcast %cst_84 : f32 to vector<8x36xf32>
    %228 = tpu.concatenate %226, %99, %100, %150, %219, %227 in 1 : vector<8x16xf32>, vector<8x4xf32>, vector<8x4xf32>, vector<8x4xf32>, vector<8x64xf32>, vector<8x36xf32> -> vector<8x128xf32>
    %c0_85 = arith.constant 0 : index
    %c0_86 = arith.constant 0 : index
    %229 = vector.load %arg5[%c0_85, %c0_86] : memref<8x128xf32, #tpu.memory_space<vmem>>, vector<8x128xf32>
    tpu.vector_store %arg5[%c0_85, %c0_86], %228 {strides = array<i32>} : memref<8x128xf32, #tpu.memory_space<vmem>>, vector<8x128xf32>,
    return
  }
}

</mosaic_0001>

<llo_original>
// kernel: dvdiffusion_forward.1
$region0: #{dvdiffusion_forward.1}
  #allocation0 [shape = 'u32[]', space=smem, size = 0x4, offset = 0x4, fixed_abs, tag = 'smem constant byte address 0x4 - core index']
  #allocation1 [shape = 'u32[72,128]{1,0:T(1,128)}', space=vmem, size = 0x9000, scoped, tag = 'internal scratch']
  %s0 = inlined_call_operand.vmem [shape: f32[8,128], index: 0, kind: input, shape index: {}]
  %s1 = inlined_call_operand.hbm [shape: bf16[64,1024], index: 1, kind: input, shape index: {}]
  %s2 = inlined_call_operand.hbm [shape: bf16[128,128], index: 2, kind: input, shape index: {}]
  %s3 = inlined_call_operand.hbm [shape: bf16[256,256], index: 3, kind: input, shape index: {}]
  %s4 = inlined_call_operand.hbm [shape: f32[16,256], index: 4, kind: input, shape index: {}]
  %s5 = inlined_call_operand.vmem [shape: f32[8,128], index: 5, kind: output, shape index: {}]
  %s6 = sld [smem:[#allocation0]]
  $region46: #{dvdiffusion_forward.1} parent=0
    _
  %s8 = ssub.s32 1, %s6
  %s9 = scalar_select 0, %s8, %s6
  $region1: #{dvdiffusion_forward.1} parent=0
    #allocation2 [shape = 'u8[131072]{0}', space=vmem, size = 0x20000, scoped, tag = 'input window, operand 1, single buffered']
    #allocation3 [shape = 's32[1]{0}', space=sflag, size = 0x4, scoped, tag = 'scoped memory for dvdiffusion_forward.1']
    #allocation4 [shape = 'u8[32768]{0}', space=vmem, size = 0x8000, scoped, tag = 'input window, operand 2, single buffered']
    #allocation5 [shape = 's32[1]{0}', space=sflag, size = 0x4, scoped, tag = 'scoped memory for dvdiffusion_forward.1']
    #allocation6 [shape = 'u8[131072]{0}', space=vmem, size = 0x20000, scoped, tag = 'input window, operand 3, single buffered']
    #allocation7 [shape = 'u8[16384]{0}', space=vmem, size = 0x4000, scoped, tag = 'input window, operand 4, single buffered']
    #allocation8 [shape = 's32[1]{0}', space=sflag, size = 0x4, scoped, tag = 'scoped memory for dvdiffusion_forward.1']
    %10 = vsyncpa [#allocation3], 0
    %11 = vsyncpa [#allocation5], 0
    %12 = vsyncpa [#allocation8], 0
    // Predicated region
    $region2: #{dvdiffusion_forward.1} parent=1 // pred_check
      _
    $region3: #{dvdiffusion_forward.1} parent=1 // pred_check_branch
      %14 = sbr.rel (0) target = $region5
    $region4: #{dvdiffusion_forward.1} parent=1 // pred_region
      _
    $region5: #{dvdiffusion_forward.1} parent=1 // pred_fallthru
      _
    // Predicated region
    $region6: #{dvdiffusion_forward.1} parent=1 // pred_check
      _
    $region7: #{dvdiffusion_forward.1} parent=1 // pred_check_branch
      %16 = sbr.rel (0) target = $region9
    $region8: #{dvdiffusion_forward.1} parent=1 // pred_region
      %18 = vsyncadd [#allocation3], 0
      %s19 = sshll.u32 %s1, 4
      %s20 = int_to_ptr.hbm [resolvable:$true] %s19
      %s21 = sshll.u32 [#allocation2], 4
      %s22 = int_to_ptr.vmem [resolvable:$true] %s21
      %27 = dma.hbm_to_vmem [thread:$0]  %s20, 4096, %s22, [#allocation3], 512, 512, 32
    $region9: #{dvdiffusion_forward.1} parent=1 // pred_fallthru
      _
    // Predicated region
    $region10: #{dvdiffusion_forward.1} parent=1 // pred_check
      _
    $region11: #{dvdiffusion_forward.1} parent=1 // pred_check_branch
      %29 = sbr.rel (0) target = $region13
    $region12: #{dvdiffusion_forward.1} parent=1 // pred_region
      %31 = vsyncadd [#allocation5], 0
      %s32 = sshll.u32 %s2, 4
      %s33 = int_to_ptr.hbm [resolvable:$true] %s32
      %s34 = sshll.u32 [#allocation4], 4
      %s35 = int_to_ptr.vmem [resolvable:$true] %s34
      %40 = dma.hbm_to_vmem [thread:$0]  %s33, 1024, %s35, [#allocation5], 64, 64, 4
    $region13: #{dvdiffusion_forward.1} parent=1 // pred_fallthru
      _
    // Predicated region
    $region14: #{dvdiffusion_forward.1} parent=1 // pred_check
      _
    $region15: #{dvdiffusion_forward.1} parent=1 // pred_check_branch
      %42 = sbr.rel (0) target = $region17
    $region16: #{dvdiffusion_forward.1} parent=1 // pred_region
      %44 = vsyncadd [#allocation5], 0
      %s45 = sshll.u32 %s3, 4
      %s46 = int_to_ptr.hbm [resolvable:$true] %s45
      %s47 = sshll.u32 [#allocation6], 4
      %s48 = int_to_ptr.vmem [resolvable:$true] %s47
      %53 = dma.hbm_to_vmem [thread:$0]  %s46, 4096, %s48, [#allocation5], 128, 128, 8
    $region17: #{dvdiffusion_forward.1} parent=1 // pred_fallthru
      _
    // Predicated region
    $region18: #{dvdiffusion_forward.1} parent=1 // pred_check
      _
    $region19: #{dvdiffusion_forward.1} parent=1 // pred_check_branch
      %55 = sbr.rel (0) target = $region21
    $region20: #{dvdiffusion_forward.1} parent=1 // pred_region
      %57 = vsyncadd [#allocation8], 0
      %s58 = sshll.u32 %s4, 4
      %s59 = int_to_ptr.hbm [resolvable:$true] %s58
      %s60 = sshll.u32 [#allocation7], 4
      %s61 = int_to_ptr.vmem [resolvable:$true] %s60
      %66 = dma.hbm_to_vmem [thread:$0]  %s59, 512, %s61, [#allocation8], 256, 256, 16
    $region21: #{dvdiffusion_forward.1} parent=1 // pred_fallthru
      _
    // Predicated region
    $region22: #{dvdiffusion_forward.1} parent=1 // pred_check
      _
    $region23: #{dvdiffusion_forward.1} parent=1 // pred_check_branch
      %68 = sbr.rel (0) target = $region25
    $region24: #{dvdiffusion_forward.1} parent=1 // pred_region
      %70 = dma.done [#allocation3], 4096
    $region25: #{dvdiffusion_forward.1} parent=1 // pred_fallthru
      _
    // Predicated region
    $region26: #{dvdiffusion_forward.1} parent=1 // pred_check
      _
    $region27: #{dvdiffusion_forward.1} parent=1 // pred_check_branch
      %72 = sbr.rel (0) target = $region29
    $region28: #{dvdiffusion_forward.1} parent=1 // pred_region
      %74 = dma.done [#allocation5], 1024
    $region29: #{dvdiffusion_forward.1} parent=1 // pred_fallthru
      _
    // Predicated region
    $region30: #{dvdiffusion_forward.1} parent=1 // pred_check
      _
    $region31: #{dvdiffusion_forward.1} parent=1 // pred_check_branch
      %76 = sbr.rel (0) target = $region33
    $region32: #{dvdiffusion_forward.1} parent=1 // pred_region
      %78 = dma.done [#allocation5], 4096
    $region33: #{dvdiffusion_forward.1} parent=1 // pred_fallthru
      _
    // Predicated region
    $region34: #{dvdiffusion_forward.1} parent=1 // pred_check
      _
    $region35: #{dvdiffusion_forward.1} parent=1 // pred_check_branch
      %80 = sbr.rel (0) target = $region37
    $region36: #{dvdiffusion_forward.1} parent=1 // pred_region
      %82 = dma.done [#allocation8], 512
    $region37: #{dvdiffusion_forward.1} parent=1 // pred_fallthru
      _
    %v84 = vld [vmem:[%s0] sm:$0xff]
    %v85 = vpack.c.bf16 %v84, %v84
    %v86 = vld [vmem:[#allocation2] sm:$0xff]
    %v87 = vld [vmem:[#allocation2 + $0x20] sm:$0xff]
    %v90 = vunpack.c.l.b16 %v86
    %v91 = vunpack.c.h.b16 %v86
    %v92 = vunpack.c.l.b16 %v87
    %v93 = vunpack.c.h.b16 %v87
    %v94 = vpack.c.b16 %v92, %v90
    %v95 = vpack.c.b16 %v93, %v91
    %vm98 = vcmask 130048
    %v100 = vsel %vm98, %v85, 0
    %102 = vmatpush.bf16.msra.mxu0 0
    %103 = vmatpush.bf16.msra.mxu0 0
    %104 = vmatpush.bf16.msra.mxu0 0
    %105 = vmatpush.bf16.msra.mxu0 0
    %106 = vmatpush.bf16.msra.mxu0 0
    %107 = vmatpush.bf16.msra.mxu0 0
    %108 = vmatpush.bf16.msra.mxu0 0
    %109 = vmatpush.bf16.msra.mxu0 %v94
    %110 = vmatmul.bf16.gmra.mxu0 %v100
    %v111 = vpop.f32.mrf.mxu0
    %v112 = vadd.f32 0.0, %v111
    %v113 = vpop.f32.mrf.mxu0
    %114 = vdwg.mxu0
    %115 = vmatpush.bf16.msra.mxu0 0
    %116 = vmatpush.bf16.msra.mxu0 0
    %117 = vmatpush.bf16.msra.mxu0 0
    %118 = vmatpush.bf16.msra.mxu0 0
    %119 = vmatpush.bf16.msra.mxu0 0
    %120 = vmatpush.bf16.msra.mxu0 0
    %121 = vmatpush.bf16.msra.mxu0 0
    %122 = vmatpush.bf16.msra.mxu0 %v95
    %123 = vmatmul.bf16.gmra.mxu0 %v100
    %v124 = vpop.f32.mrf.mxu0
    %v125 = vadd.f32 0.0, %v124
    %v126 = vpop.f32.mrf.mxu0
    %127 = vdwg.mxu0
    %v128 = vld [vmem:[#allocation7] ss:$8 sm:$0x3]
    %s129 = scalar_lea.vmem [#allocation7], 1
    %v130 = vld [vmem:[%s129] ss:$8 sm:$0x3]
    %v131 = vrot.slane %v112, 4
    %v132 = vadd.f32 %v112, %v131
    %v133 = vrot.slane %v132, 2
    %v134 = vadd.f32 %v132, %v133
    %v135 = vrot.slane %v134, 1
    %v136 = vadd.f32 %v134, %v135
    %v137 = vrot.slane %v125, 4
    %v138 = vadd.f32 %v125, %v137
    %v139 = vrot.slane %v138, 2
    %v140 = vadd.f32 %v138, %v139
    %v141 = vrot.slane %v140, 1
    %v142 = vadd.f32 %v140, %v141
    %v143 = vrcp.pop 8.0
    %v144 = vmul.f32 8.0, %v143
    %v145 = vsub.f32 1.0, %v144
    %v146 = vmul.f32 %v143, %v145
    %v147 = vadd.f32 %v143, %v146
    %vm148 = vweird.f32 %v143
    %v149 = vsel %vm148, %v143, %v147
    %v150 = vmul.f32 %v136, %v149
    %v151 = vmul.f32 %v142, %v149
    %v152 = vmul.f32 %v112, %v112
    %v153 = vmul.f32 %v125, %v125
    %v154 = vrot.slane %v152, 4
    %v155 = vadd.f32 %v152, %v154
    %v156 = vrot.slane %v155, 2
    %v157 = vadd.f32 %v155, %v156
    %v158 = vrot.slane %v157, 1
    %v159 = vadd.f32 %v157, %v158
    %v160 = vrot.slane %v153, 4
    %v161 = vadd.f32 %v153, %v160
    %v162 = vrot.slane %v161, 2
    %v163 = vadd.f32 %v161, %v162
    %v164 = vrot.slane %v163, 1
    %v165 = vadd.f32 %v163, %v164
    %v166 = vmul.f32 %v159, %v149
    %v167 = vmul.f32 %v165, %v149
    %v168 = vmul.f32 %v150, %v150
    %v169 = vmul.f32 %v151, %v151
    %v170 = vsub.f32 %v166, %v168
    %v171 = vsub.f32 %v167, %v169
    %v172 = vmax.f32 %v170, 0.0
    %v173 = vmax.f32 %v171, 0.0
    %v174 = vadd.f32 %v172, 1e-05
    %v175 = vadd.f32 %v173, 1e-05
    %v176 = vrsqrt.pop %v174
    %v177 = vmul.f32 %v176, %v174
    %v178 = vmul.f32 %v177, %v176
    %v179 = vmul.f32 0.5, %v178
    %v180 = vsub.f32 1.5, %v179
    %v181 = vmul.f32 %v176, %v180
    %vm182 = vweird.f32 %v174
    %vm183 = vweird.f32 %v176
    %vm184 = vmor %vm182, %vm183
    %v185 = vsel %vm184, %v176, %v181
    %v186 = vrsqrt.pop %v175
    %v187 = vmul.f32 %v186, %v175
    %v188 = vmul.f32 %v187, %v186
    %v189 = vmul.f32 0.5, %v188
    %v190 = vsub.f32 1.5, %v189
    %v191 = vmul.f32 %v186, %v190
    %vm192 = vweird.f32 %v175
    %vm193 = vweird.f32 %v186
    %vm194 = vmor %vm192, %vm193
    %v195 = vsel %vm194, %v186, %v191
    %v198 = vrot.slane %v195, 7
    %vm199 = vcmask 1040384
    %v200 = vsel %vm199, %v185, %v198
    %v202 = vmul.f32 %v128, %v200
    %v204 = vperm.slane %v202, 0
    %v205 = vperm.slane %v202, 1
    %v208 = vmul.f32 %v150, %v204
    %v209 = vmul.f32 %v151, %v205
    %v212 = vrot.slane %v209, 7
    %v213 = vsel %vm199, %v208, %v212
    %v215 = vsub.f32 %v130, %v213
    %v216 = vmul.f32 %v112, %v204
    %v217 = vmul.f32 %v125, %v205
    %v219 = vperm.slane %v215, 0
    %v220 = vperm.slane %v215, 1
    %v223 = vadd.f32 %v216, %v219
    %v224 = vadd.f32 %v217, %v220
    %v225 = vmax.f32 %v223, 0.0
    %v226 = vmax.f32 %v224, 0.0
    %v227 = vpack.c.bf16 %v225, %v225
    %v228 = vpack.c.bf16 %v226, %v226
    %v229 = vld [vmem:[#allocation6] sm:$0xf]
    %v230 = vld [vmem:[#allocation6 + $0x8] sm:$0xf]
    %v231 = vld [vmem:[#allocation6 + $0x10] sm:$0xf]
    %v232 = vld [vmem:[#allocation6 + $0x18] sm:$0xf]
    %v233 = vld [vmem:[#allocation6 + $0x20] sm:$0xf]
    %v234 = vld [vmem:[#allocation6 + $0x28] sm:$0xf]
    %v235 = vld [vmem:[#allocation6 + $0x30] sm:$0xf]
    %v236 = vld [vmem:[#allocation6 + $0x38] sm:$0xf]
    %v237 = vld [vmem:[#allocation6 + $0x40] sm:$0xf]
    %v238 = vld [vmem:[#allocation6 + $0x48] sm:$0xf]
    %v239 = vld [vmem:[#allocation6 + $0x50] sm:$0xf]
    %v240 = vld [vmem:[#allocation6 + $0x58] sm:$0xf]
    %v241 = vld [vmem:[#allocation6 + $0x60] sm:$0xf]
    %v242 = vld [vmem:[#allocation6 + $0x68] sm:$0xf]
    %v243 = vld [vmem:[#allocation6 + $0x70] sm:$0xf]
    %v244 = vld [vmem:[#allocation6 + $0x78] sm:$0xf]
    %v245 = vld [vmem:[#allocation6 + $0x80] sm:$0xf]
    %v246 = vld [vmem:[#allocation6 + $0x88] sm:$0xf]
    %v247 = vld [vmem:[#allocation6 + $0x90] sm:$0xf]
    %v248 = vld [vmem:[#allocation6 + $0x98] sm:$0xf]
    %v249 = vld [vmem:[#allocation6 + $0xa0] sm:$0xf]
    %v250 = vld [vmem:[#allocation6 + $0xa8] sm:$0xf]
    %v251 = vld [vmem:[#allocation6 + $0xb0] sm:$0xf]
    %v252 = vld [vmem:[#allocation6 + $0xb8] sm:$0xf]
    %v253 = vld [vmem:[#allocation6 + $0xc0] sm:$0xf]
    %v254 = vld [vmem:[#allocation6 + $0xc8] sm:$0xf]
    %v255 = vld [vmem:[#allocation6 + $0xd0] sm:$0xf]
    %v256 = vld [vmem:[#allocation6 + $0xd8] sm:$0xf]
    %v257 = vld [vmem:[#allocation6 + $0xe0] sm:$0xf]
    %v258 = vld [vmem:[#allocation6 + $0xe8] sm:$0xf]
    %v259 = vld [vmem:[#allocation6 + $0xf0] sm:$0xf]
    %v260 = vld [vmem:[#allocation6 + $0xf8] sm:$0xf]
    %v293 = vunpack.c.l.b16 %v229
    %v294 = vunpack.c.l.b16 %v230
    %v295 = vunpack.c.l.b16 %v231
    %v296 = vunpack.c.l.b16 %v232
    %v297 = vunpack.c.l.b16 %v233
    %v298 = vunpack.c.l.b16 %v234
    %v299 = vunpack.c.l.b16 %v235
    %v300 = vunpack.c.l.b16 %v236
    %v301 = vunpack.c.l.b16 %v237
    %v302 = vunpack.c.l.b16 %v238
    %v303 = vunpack.c.l.b16 %v239
    %v304 = vunpack.c.l.b16 %v240
    %v305 = vunpack.c.l.b16 %v241
    %v306 = vunpack.c.l.b16 %v242
    %v307 = vunpack.c.l.b16 %v243
    %v308 = vunpack.c.l.b16 %v244
    %v309 = vunpack.c.l.b16 %v245
    %v310 = vunpack.c.l.b16 %v246
    %v311 = vunpack.c.l.b16 %v247
    %v312 = vunpack.c.l.b16 %v248
    %v313 = vunpack.c.l.b16 %v249
    %v314 = vunpack.c.l.b16 %v250
    %v315 = vunpack.c.l.b16 %v251
    %v316 = vunpack.c.l.b16 %v252
    %v317 = vunpack.c.l.b16 %v253
    %v318 = vunpack.c.l.b16 %v254
    %v319 = vunpack.c.l.b16 %v255
    %v320 = vunpack.c.l.b16 %v256
    %v321 = vunpack.c.l.b16 %v257
    %v322 = vunpack.c.l.b16 %v258
    %v323 = vunpack.c.l.b16 %v259
    %v324 = vunpack.c.l.b16 %v260
    %v325 = vpack.c.b16 %v294, %v293
    %v326 = vpack.c.b16 %v296, %v295
    %v327 = vpack.c.b16 %v298, %v297
    %v328 = vpack.c.b16 %v300, %v299
    %v329 = vpack.c.b16 %v302, %v301
    %v330 = vpack.c.b16 %v304, %v303
    %v331 = vpack.c.b16 %v306, %v305
    %v332 = vpack.c.b16 %v308, %v307
    %v333 = vpack.c.b16 %v310, %v309
    %v334 = vpack.c.b16 %v312, %v311
    %v335 = vpack.c.b16 %v314, %v313
    %v336 = vpack.c.b16 %v316, %v315
    %v337 = vpack.c.b16 %v318, %v317
    %v338 = vpack.c.b16 %v320, %v319
    %v339 = vpack.c.b16 %v322, %v321
    %v340 = vpack.c.b16 %v324, %v323
    %357 = vmatpush.bf16.msra.mxu0 %v332
    %358 = vmatpush.bf16.msra.mxu0 %v331
    %359 = vmatpush.bf16.msra.mxu0 %v330
    %360 = vmatpush.bf16.msra.mxu0 %v329
    %361 = vmatpush.bf16.msra.mxu0 %v328
    %362 = vmatpush.bf16.msra.mxu0 %v327
    %363 = vmatpush.bf16.msra.mxu0 %v326
    %364 = vmatpush.bf16.msra.mxu0 %v325
    %365 = vmatmul.bf16.gmra.mxu0 %v227
    %v366 = vpop.f32.mrf.mxu0
    %v367 = vadd.f32 0.0, %v366
    %v368 = vpop.f32.mrf.mxu0
    %369 = vdwg.mxu0
    %370 = vmatpush.bf16.msra.mxu0 %v340
    %371 = vmatpush.bf16.msra.mxu0 %v339
    %372 = vmatpush.bf16.msra.mxu0 %v338
    %373 = vmatpush.bf16.msra.mxu0 %v337
    %374 = vmatpush.bf16.msra.mxu0 %v336
    %375 = vmatpush.bf16.msra.mxu0 %v335
    %376 = vmatpush.bf16.msra.mxu0 %v334
    %377 = vmatpush.bf16.msra.mxu0 %v333
    %378 = vmatmul.bf16.gmra.mxu0 %v228
    %v379 = vpop.f32.mrf.mxu0
    %v380 = vadd.f32 %v367, %v379
    %v381 = vpop.f32.mrf.mxu0
    %382 = vdwg.mxu0
    %v383 = vld [vmem:[#allocation7 + $0x2] ss:$0 sm:$0xff]
    %v384 = vld [vmem:[#allocation7 + $0x3] ss:$0 sm:$0xff]
    %v385 = vrot.slane %v380, 4
    %v386 = vadd.f32 %v380, %v385
    %v387 = vrot.slane %v386, 2
    %v388 = vadd.f32 %v386, %v387
    %v389 = vrot.slane %v388, 1
    %v390 = vadd.f32 %v388, %v389
    %v391 = vmul.f32 %v390, %v149
    %v392 = vmul.f32 %v380, %v380
    %v393 = vrot.slane %v392, 4
    %v394 = vadd.f32 %v392, %v393
    %v395 = vrot.slane %v394, 2
    %v396 = vadd.f32 %v394, %v395
    %v397 = vrot.slane %v396, 1
    %v398 = vadd.f32 %v396, %v397
    %v399 = vmul.f32 %v398, %v149
    %v400 = vmul.f32 %v391, %v391
    %v401 = vsub.f32 %v399, %v400
    %v402 = vmax.f32 %v401, 0.0
    %v403 = vadd.f32 %v402, 1e-05
    %v404 = vrsqrt.pop %v403
    %v405 = vmul.f32 %v404, %v403
    %v406 = vmul.f32 %v405, %v404
    %v407 = vmul.f32 0.5, %v406
    %v408 = vsub.f32 1.5, %v407
    %v409 = vmul.f32 %v404, %v408
    %vm410 = vweird.f32 %v403
    %vm411 = vweird.f32 %v404
    %vm412 = vmor %vm410, %vm411
    %v413 = vsel %vm412, %v404, %v409
    %v414 = vmul.f32 %v383, %v413
    %v415 = vmul.f32 %v391, %v414
    %v416 = vsub.f32 %v384, %v415
    %v417 = vmul.f32 %v380, %v414
    %v418 = vadd.f32 %v417, %v416
    %v419 = vmax.f32 %v418, 0.0
    %v420 = vpack.c.bf16 %v419, %v419
    %v421 = vld [vmem:[#allocation4] sm:$0xf]
    %v422 = vld [vmem:[#allocation4 + $0x4] sm:$0xf]
    %v423 = vld [vmem:[#allocation4 + $0x8] sm:$0xf]
    %v424 = vld [vmem:[#allocation4 + $0xc] sm:$0xf]
    %v425 = vld [vmem:[#allocation4 + $0x10] sm:$0xf]
    %v426 = vld [vmem:[#allocation4 + $0x14] sm:$0xf]
    %v427 = vld [vmem:[#allocation4 + $0x18] sm:$0xf]
    %v428 = vld [vmem:[#allocation4 + $0x1c] sm:$0xf]
    %v429 = vld [vmem:[#allocation4 + $0x20] sm:$0xf]
    %v430 = vld [vmem:[#allocation4 + $0x24] sm:$0xf]
    %v431 = vld [vmem:[#allocation4 + $0x28] sm:$0xf]
    %v432 = vld [vmem:[#allocation4 + $0x2c] sm:$0xf]
    %v433 = vld [vmem:[#allocation4 + $0x30] sm:$0xf]
    %v434 = vld [vmem:[#allocation4 + $0x34] sm:$0xf]
    %v435 = vld [vmem:[#allocation4 + $0x38] sm:$0xf]
    %v436 = vld [vmem:[#allocation4 + $0x3c] sm:$0xf]
    %v453 = vunpack.c.l.b16 %v421
    %v454 = vunpack.c.l.b16 %v422
    %v455 = vunpack.c.l.b16 %v423
    %v456 = vunpack.c.l.b16 %v424
    %v457 = vunpack.c.l.b16 %v425
    %v458 = vunpack.c.l.b16 %v426
    %v459 = vunpack.c.l.b16 %v427
    %v460 = vunpack.c.l.b16 %v428
    %v461 = vunpack.c.l.b16 %v429
    %v462 = vunpack.c.l.b16 %v430
    %v463 = vunpack.c.l.b16 %v431
    %v464 = vunpack.c.l.b16 %v432
    %v465 = vunpack.c.l.b16 %v433
    %v466 = vunpack.c.l.b16 %v434
    %v467 = vunpack.c.l.b16 %v435
    %v468 = vunpack.c.l.b16 %v436
    %v469 = vpack.c.b16 %v454, %v453
    %v470 = vpack.c.b16 %v456, %v455
    %v471 = vpack.c.b16 %v458, %v457
    %v472 = vpack.c.b16 %v460, %v459
    %v473 = vpack.c.b16 %v462, %v461
    %v474 = vpack.c.b16 %v464, %v463
    %v475 = vpack.c.b16 %v466, %v465
    %v476 = vpack.c.b16 %v468, %v467
    %485 = vmatpush.bf16.msra.mxu0 %v476
    %486 = vmatpush.bf16.msra.mxu0 %v475
    %487 = vmatpush.bf16.msra.mxu0 %v474
    %488 = vmatpush.bf16.msra.mxu0 %v473
    %489 = vmatpush.bf16.msra.mxu0 %v472
    %490 = vmatpush.bf16.msra.mxu0 %v471
    %491 = vmatpush.bf16.msra.mxu0 %v470
    %492 = vmatpush.bf16.msra.mxu0 %v469
    %493 = vmatmul.bf16.gmra.mxu0 %v420
    %v494 = vpop.f32.mrf.mxu0
    %v495 = vadd.f32 0.0, %v494
    %v496 = vpop.f32.mrf.mxu0
    %497 = vdwg.mxu0
    %v498 = vld [vmem:[#allocation7 + $0x4] ss:$0 sm:$0xff]
    %v499 = vld [vmem:[#allocation7 + $0x5] ss:$0 sm:$0xff]
    %vm500 = vcmask 261120
    %v501 = vsel %vm500, %v495, 0.0
    %v502 = vrot.slane %v501, 4
    %v503 = vadd.f32 %v501, %v502
    %v504 = vrot.slane %v503, 2
    %v505 = vadd.f32 %v503, %v504
    %v506 = vrot.slane %v505, 1
    %v507 = vadd.f32 %v505, %v506
    %v508 = vmul.f32 %v507, %v149
    %v509 = vmul.f32 %v495, %v495
    %v510 = vsel %vm500, %v509, 0.0
    %v511 = vrot.slane %v510, 4
    %v512 = vadd.f32 %v510, %v511
    %v513 = vrot.slane %v512, 2
    %v514 = vadd.f32 %v512, %v513
    %v515 = vrot.slane %v514, 1
    %v516 = vadd.f32 %v514, %v515
    %v517 = vmul.f32 %v516, %v149
    %v518 = vmul.f32 %v508, %v508
    %v519 = vsub.f32 %v517, %v518
    %v520 = vmax.f32 %v519, 0.0
    %v521 = vadd.f32 %v520, 1e-05
    %v522 = vrsqrt.pop %v521
    %v523 = vmul.f32 %v522, %v521
    %v524 = vmul.f32 %v523, %v522
    %v525 = vmul.f32 0.5, %v524
    %v526 = vsub.f32 1.5, %v525
    %v527 = vmul.f32 %v522, %v526
    %vm528 = vweird.f32 %v521
    %vm529 = vweird.f32 %v522
    %vm530 = vmor %vm528, %vm529
    %v531 = vsel %vm530, %v522, %v527
    %v532 = vmul.f32 %v498, %v531
    %v533 = vmul.f32 %v508, %v532
    %v534 = vsub.f32 %v499, %v533
    %v535 = vmul.f32 %v495, %v532
    %v536 = vadd.f32 %v535, %v534
    %v537 = vmax.f32 %v536, 0.0
    %v538 = vpack.c.bf16 %v537, %v537
    %v539 = vld [vmem:[#allocation2 + $0x8] sm:$0xf]
    %v540 = vld [vmem:[#allocation2 + $0x28] sm:$0xf]
    %v541 = vld [vmem:[#allocation2 + $0x48] sm:$0xf]
    %v542 = vld [vmem:[#allocation2 + $0x68] sm:$0xf]
    %v547 = vunpack.c.l.b16 %v539
    %v548 = vunpack.c.l.b16 %v540
    %v549 = vunpack.c.l.b16 %v541
    %v550 = vunpack.c.l.b16 %v542
    %v551 = vpack.c.b16 %v548, %v547
    %v552 = vpack.c.b16 %v550, %v549
    %v556 = vsel %vm500, %v538, 0
    %558 = vmatpush.bf16.msra.mxu0 0
    %559 = vmatpush.bf16.msra.mxu0 0
    %560 = vmatpush.bf16.msra.mxu0 0
    %561 = vmatpush.bf16.msra.mxu0 0
    %562 = vmatpush.bf16.msra.mxu0 0
    %563 = vmatpush.bf16.msra.mxu0 0
    %564 = vmatpush.bf16.msra.mxu0 %v552
    %565 = vmatpush.bf16.msra.mxu0 %v551
    %566 = vmatmul.bf16.gmra.mxu0 %v556
    %v567 = vpop.f32.mrf.mxu0
    %v568 = vadd.f32 0.0, %v567
    %v569 = vpop.f32.mrf.mxu0
    %570 = vdwg.mxu0
    %v571 = vld [vmem:[#allocation7 + $0x14] ss:$0 sm:$0xff]
    %v572 = vadd.f32 %v568, %v571
    %v573 = vld [vmem:[#allocation7 + $0x6] ss:$0 sm:$0xff]
    %v574 = vld [vmem:[#allocation7 + $0x7] ss:$0 sm:$0xff]
    %vm575 = vcmask 195648
    %v576 = vsel %vm575, %v568, 0.0
    %v577 = vrot.slane %v576, 4
    %v578 = vadd.f32 %v576, %v577
    %v579 = vrot.slane %v578, 2
    %v580 = vadd.f32 %v578, %v579
    %v581 = vrot.slane %v580, 1
    %v582 = vadd.f32 %v580, %v581
    %v583 = vmul.f32 %v582, %v149
    %v584 = vmul.f32 %v568, %v568
    %v585 = vsel %vm575, %v584, 0.0
    %v586 = vrot.slane %v585, 4
    %v587 = vadd.f32 %v585, %v586
    %v588 = vrot.slane %v587, 2
    %v589 = vadd.f32 %v587, %v588
    %v590 = vrot.slane %v589, 1
    %v591 = vadd.f32 %v589, %v590
    %v592 = vmul.f32 %v591, %v149
    %v593 = vmul.f32 %v583, %v583
    %v594 = vsub.f32 %v592, %v593
    %v595 = vmax.f32 %v594, 0.0
    %v596 = vadd.f32 %v595, 1e-05
    %v597 = vrsqrt.pop %v596
    %v598 = vmul.f32 %v597, %v596
    %v599 = vmul.f32 %v598, %v597
    %v600 = vmul.f32 0.5, %v599
    %v601 = vsub.f32 1.5, %v600
    %v602 = vmul.f32 %v597, %v601
    %vm603 = vweird.f32 %v596
    %vm604 = vweird.f32 %v597
    %vm605 = vmor %vm603, %vm604
    %v606 = vsel %vm605, %v597, %v602
    %608 = vrot.lane.b32.xlu0 %v606, 120
    %v609 = vpop.permute.xlu0 %608
    %v611 = vmul.f32 %v573, %v609
    %613 = vrot.lane.b32.xlu0 %v611, 8
    %v614 = vpop.permute.xlu0 %613
    %v616 = vmul.f32 %v583, %v614
    %618 = vrot.lane.b32.xlu0 %v616, 120
    %v619 = vpop.permute.xlu0 %618
    %v621 = vsub.f32 %v574, %v619
    %v622 = vperm.slane %v611, 0
    %624 = vrot.lane.b32.xlu0 %v622, 8
    %v625 = vpop.permute.xlu0 %624
    %v627 = vmul.f32 %v568, %v625
    %v628 = vperm.slane %v621, 0
    %630 = vrot.lane.b32.xlu0 %v628, 8
    %v631 = vpop.permute.xlu0 %630
    %v633 = vadd.f32 %v627, %v631
    %v634 = vmax.f32 %v633, 0.0
    %v635 = vmul.f32 %v572, 0.5
    %v636 = vmul.f32 %v635, 1.442695
    %v637 = vpow.pop %v636
    %639 = vrot.lane.b32.xlu0 %v637, 12
    %v640 = vpop.permute.xlu0 %639
    %v642 = vmul.f32 %v84, %v640
    %644 = vrot.lane.b32.xlu0 %v642, 112
    %v645 = vpop.permute.xlu0 %644
    %v647 = vadd.f32 %v572, %v645
    %649 = vrot.lane.b32.xlu0 %v634, 120
    %v650 = vpop.permute.xlu0 %649
    %653 = vrot.lane.b32.xlu0 %v647, 16
    %v654 = vpop.permute.xlu0 %653
    %v656 = vsel %vm98, %v650, %v654
    %v657 = vpack.c.bf16 %v656, %v656
    %v658 = vld [vmem:[#allocation2 + $0xc] sm:$0xf]
    %v659 = vld [vmem:[#allocation2 + $0x2c] sm:$0xf]
    %v660 = vld [vmem:[#allocation2 + $0x4c] sm:$0x3]
    %v664 = vunpack.c.l.b16 %v658
    %v665 = vunpack.c.l.b16 %v659
    %v666 = vunpack.c.l.b16 %v660
    %v667 = vpack.c.b16 %v665, %v664
    %v668 = vpack.c.b16 %v666, %v666
    %vm670 = vcmask 162816
    %v672 = vsel %vm670, %v657, 0
    %vm674 = vcmask 1041408
    %v676 = vsel %vm674, %v668, 0
    %678 = vmatpush.bf16.msra.mxu0 0
    %679 = vmatpush.bf16.msra.mxu0 0
    %680 = vmatpush.bf16.msra.mxu0 0
    %681 = vmatpush.bf16.msra.mxu0 0
    %682 = vmatpush.bf16.msra.mxu0 0
    %683 = vmatpush.bf16.msra.mxu0 0
    %684 = vmatpush.bf16.msra.mxu0 %v676
    %685 = vmatpush.bf16.msra.mxu0 %v667
    %686 = vmatmul.bf16.gmra.mxu0 %v672
    %v687 = vpop.f32.mrf.mxu0
    %v688 = vadd.f32 0.0, %v687
    %v689 = vpop.f32.mrf.mxu0
    %690 = vdwg.mxu0
    %v691 = vld [vmem:[#allocation7 + $0x15] ss:$0 sm:$0xff]
    %v692 = vadd.f32 %v688, %v691
    %vm693 = vcmask 31744
    %v694 = vsel %vm693, %v692, -inf
    %695 = vmax.xlane.f32.xlu0 %v694
    %v696 = vpop.xlane.xlu0 %695
    %v697 = vsub.f32 %v692, %v696
    %v698 = vmul.f32 %v697, 1.442695
    %v699 = vpow.pop %v698
    %v700 = vsel %vm693, %v699, 0.0
    %701 = vadd.xlane.f32.xlu0 %v700
    %v702 = vpop.xlane.xlu0 %701
    %v703 = vrcp.pop %v702
    %v704 = vmul.f32 %v702, %v703
    %v705 = vsub.f32 1.0, %v704
    %v706 = vmul.f32 %v703, %v705
    %v707 = vadd.f32 %v703, %v706
    %vm708 = vweird.f32 %v702
    %vm709 = vweird.f32 %v703
    %vm710 = vmor %vm708, %vm709
    %v711 = vsel %vm710, %v703, %v707
    %v712 = vand.u32 2147483647, %v702
    %vm713 = vcmp.eq.f32.partialorder %v712, 8.507059e+37
    %v714 = vand.u32 %v702, 2147483648
    %v715 = vor.u32 1.1754944e-38, %v714
    %v716 = vsel %vm713, %v715, %v711
    %v717 = vmul.f32 %v699, %v716
    %v718 = vld [vmem:[#allocation7 + $0x10] ss:$0 sm:$0xff]
    %v719 = vld [vmem:[#allocation7 + $0x11] ss:$0 sm:$0xff]
    %vm720 = vcmask 162848
    %v721 = vsel %vm720, %v688, 0.0
    %v722 = vrot.slane %v721, 4
    %v723 = vadd.f32 %v721, %v722
    %v724 = vrot.slane %v723, 2
    %v725 = vadd.f32 %v723, %v724
    %v726 = vrot.slane %v725, 1
    %v727 = vadd.f32 %v725, %v726
    %v728 = vmul.f32 %v727, %v149
    %v729 = vmul.f32 %v688, %v688
    %v730 = vsel %vm720, %v729, 0.0
    %v731 = vrot.slane %v730, 4
    %v732 = vadd.f32 %v730, %v731
    %v733 = vrot.slane %v732, 2
    %v734 = vadd.f32 %v732, %v733
    %v735 = vrot.slane %v734, 1
    %v736 = vadd.f32 %v734, %v735
    %v737 = vmul.f32 %v736, %v149
    %v738 = vmul.f32 %v728, %v728
    %v739 = vsub.f32 %v737, %v738
    %v740 = vmax.f32 %v739, 0.0
    %v741 = vadd.f32 %v740, 1e-05
    %v742 = vrsqrt.pop %v741
    %v743 = vmul.f32 %v742, %v741
    %v744 = vmul.f32 %v743, %v742
    %v745 = vmul.f32 0.5, %v744
    %v746 = vsub.f32 1.5, %v745
    %v747 = vmul.f32 %v742, %v746
    %vm748 = vweird.f32 %v741
    %vm749 = vweird.f32 %v742
    %vm750 = vmor %vm748, %vm749
    %v751 = vsel %vm750, %v742, %v747
    %753 = vrot.lane.b32.xlu0 %v751, 124
    %v754 = vpop.permute.xlu0 %753
    %v756 = vmul.f32 %v718, %v754
    %758 = vrot.lane.b32.xlu0 %v756, 4
    %v759 = vpop.permute.xlu0 %758
    %v761 = vmul.f32 %v728, %v759
    %763 = vrot.lane.b32.xlu0 %v761, 124
    %v764 = vpop.permute.xlu0 %763
    %v766 = vsub.f32 %v719, %v764
    %v767 = vperm.slane %v756, 0
    %769 = vrot.lane.b32.xlu0 %v767, 4
    %v770 = vpop.permute.xlu0 %769
    %v772 = vmul.f32 %v688, %v770
    %v773 = vperm.slane %v766, 0
    %775 = vrot.lane.b32.xlu0 %v773, 4
    %v776 = vpop.permute.xlu0 %775
    %v778 = vadd.f32 %v772, %v776
    %v779 = vmax.f32 %v778, 0.0
    %v780 = vpack.c.bf16 %v779, %v779
    %v781 = vld [vmem:[#allocation2 + $0x10] sm:$0xff]
    %v782 = vld [vmem:[#allocation2 + $0x30] sm:$0xff]
    %784 = vrot.lane.b32.xlu0 %v780, 124
    %v785 = vpop.permute.xlu0 %784
    %v788 = vunpack.c.l.b16 %v781
    %v789 = vunpack.c.h.b16 %v781
    %v790 = vunpack.c.l.b16 %v782
    %v791 = vunpack.c.h.b16 %v782
    %v792 = vpack.c.b16 %v790, %v788
    %v793 = vpack.c.b16 %v791, %v789
    %v797 = vsel %vm98, %v785, 0
    %799 = vmatpush.bf16.msra.mxu0 0
    %800 = vmatpush.bf16.msra.mxu0 0
    %801 = vmatpush.bf16.msra.mxu0 0
    %802 = vmatpush.bf16.msra.mxu0 0
    %803 = vmatpush.bf16.msra.mxu0 0
    %804 = vmatpush.bf16.msra.mxu0 0
    %805 = vmatpush.bf16.msra.mxu0 0
    %806 = vmatpush.bf16.msra.mxu0 %v792
    %807 = vmatmul.bf16.gmra.mxu0 %v797
    %v808 = vpop.f32.mrf.mxu0
    %v809 = vadd.f32 0.0, %v808
    %v810 = vpop.f32.mrf.mxu0
    %811 = vdwg.mxu0
    %812 = vmatpush.bf16.msra.mxu0 0
    %813 = vmatpush.bf16.msra.mxu0 0
    %814 = vmatpush.bf16.msra.mxu0 0
    %815 = vmatpush.bf16.msra.mxu0 0
    %816 = vmatpush.bf16.msra.mxu0 0
    %817 = vmatpush.bf16.msra.mxu0 0
    %818 = vmatpush.bf16.msra.mxu0 0
    %819 = vmatpush.bf16.msra.mxu0 %v793
    %820 = vmatmul.bf16.gmra.mxu0 %v797
    %v821 = vpop.f32.mrf.mxu0
    %v822 = vadd.f32 0.0, %v821
    %v823 = vpop.f32.mrf.mxu0
    %824 = vdwg.mxu0
    %s825 = scalar_lea.vmem [#allocation7], 18
    %v826 = vld [vmem:[%s825] ss:$8 sm:$0x3]
    %s827 = scalar_lea.vmem [#allocation7], 19
    %v828 = vld [vmem:[%s827] ss:$8 sm:$0x3]
    %v829 = vrot.slane %v809, 4
    %v830 = vadd.f32 %v809, %v829
    %v831 = vrot.slane %v830, 2
    %v832 = vadd.f32 %v830, %v831
    %v833 = vrot.slane %v832, 1
    %v834 = vadd.f32 %v832, %v833
    %v835 = vrot.slane %v822, 4
    %v836 = vadd.f32 %v822, %v835
    %v837 = vrot.slane %v836, 2
    %v838 = vadd.f32 %v836, %v837
    %v839 = vrot.slane %v838, 1
    %v840 = vadd.f32 %v838, %v839
    %v841 = vmul.f32 %v834, %v149
    %v842 = vmul.f32 %v840, %v149
    %v843 = vmul.f32 %v809, %v809
    %v844 = vmul.f32 %v822, %v822
    %v845 = vrot.slane %v843, 4
    %v846 = vadd.f32 %v843, %v845
    %v847 = vrot.slane %v846, 2
    %v848 = vadd.f32 %v846, %v847
    %v849 = vrot.slane %v848, 1
    %v850 = vadd.f32 %v848, %v849
    %v851 = vrot.slane %v844, 4
    %v852 = vadd.f32 %v844, %v851
    %v853 = vrot.slane %v852, 2
    %v854 = vadd.f32 %v852, %v853
    %v855 = vrot.slane %v854, 1
    %v856 = vadd.f32 %v854, %v855
    %v857 = vmul.f32 %v850, %v149
    %v858 = vmul.f32 %v856, %v149
    %v859 = vmul.f32 %v841, %v841
    %v860 = vmul.f32 %v842, %v842
    %v861 = vsub.f32 %v857, %v859
    %v862 = vsub.f32 %v858, %v860
    %v863 = vmax.f32 %v861, 0.0
    %v864 = vmax.f32 %v862, 0.0
    %v865 = vadd.f32 %v863, 1e-05
    %v866 = vadd.f32 %v864, 1e-05
    %v867 = vrsqrt.pop %v865
    %v868 = vmul.f32 %v867, %v865
    %v869 = vmul.f32 %v868, %v867
    %v870 = vmul.f32 0.5, %v869
    %v871 = vsub.f32 1.5, %v870
    %v872 = vmul.f32 %v867, %v871
    %vm873 = vweird.f32 %v865
    %vm874 = vweird.f32 %v867
    %vm875 = vmor %vm873, %vm874
    %v876 = vsel %vm875, %v867, %v872
    %v877 = vrsqrt.pop %v866
    %v878 = vmul.f32 %v877, %v866
    %v879 = vmul.f32 %v878, %v877
    %v880 = vmul.f32 0.5, %v879
    %v881 = vsub.f32 1.5, %v880
    %v882 = vmul.f32 %v877, %v881
    %vm883 = vweird.f32 %v866
    %vm884 = vweird.f32 %v877
    %vm885 = vmor %vm883, %vm884
    %v886 = vsel %vm885, %v877, %v882
    %v889 = vrot.slane %v886, 7
    %v890 = vsel %vm199, %v876, %v889
    %v892 = vmul.f32 %v826, %v890
    %v894 = vperm.slane %v892, 0
    %v895 = vperm.slane %v892, 1
    %v898 = vmul.f32 %v841, %v894
    %v899 = vmul.f32 %v842, %v895
    %v902 = vrot.slane %v899, 7
    %v903 = vsel %vm199, %v898, %v902
    %v905 = vsub.f32 %v828, %v903
    %v906 = vmul.f32 %v809, %v894
    %v907 = vmul.f32 %v822, %v895
    %v909 = vperm.slane %v905, 0
    %v910 = vperm.slane %v905, 1
    %v913 = vadd.f32 %v906, %v909
    %v914 = vadd.f32 %v907, %v910
    %v915 = vmax.f32 %v913, 0.0
    %v916 = vmax.f32 %v914, 0.0
    %v917 = vpack.c.bf16 %v915, %v915
    %v918 = vpack.c.bf16 %v916, %v916
    %v919 = vld [vmem:[#allocation6 + $0x4] sm:$0xf]
    %v920 = vld [vmem:[#allocation6 + $0xc] sm:$0xf]
    %v921 = vld [vmem:[#allocation6 + $0x14] sm:$0xf]
    %v922 = vld [vmem:[#allocation6 + $0x1c] sm:$0xf]
    %v923 = vld [vmem:[#allocation6 + $0x24] sm:$0xf]
    %v924 = vld [vmem:[#allocation6 + $0x2c] sm:$0xf]
    %v925 = vld [vmem:[#allocation6 + $0x34] sm:$0xf]
    %v926 = vld [vmem:[#allocation6 + $0x3c] sm:$0xf]
    %v927 = vld [vmem:[#allocation6 + $0x44] sm:$0xf]
    %v928 = vld [vmem:[#allocation6 + $0x4c] sm:$0xf]
    %v929 = vld [vmem:[#allocation6 + $0x54] sm:$0xf]
    %v930 = vld [vmem:[#allocation6 + $0x5c] sm:$0xf]
    %v931 = vld [vmem:[#allocation6 + $0x64] sm:$0xf]
    %v932 = vld [vmem:[#allocation6 + $0x6c] sm:$0xf]
    %v933 = vld [vmem:[#allocation6 + $0x74] sm:$0xf]
    %v934 = vld [vmem:[#allocation6 + $0x7c] sm:$0xf]
    %v935 = vld [vmem:[#allocation6 + $0x84] sm:$0xf]
    %v936 = vld [vmem:[#allocation6 + $0x8c] sm:$0xf]
    %v937 = vld [vmem:[#allocation6 + $0x94] sm:$0xf]
    %v938 = vld [vmem:[#allocation6 + $0x9c] sm:$0xf]
    %v939 = vld [vmem:[#allocation6 + $0xa4] sm:$0xf]
    %v940 = vld [vmem:[#allocation6 + $0xac] sm:$0xf]
    %v941 = vld [vmem:[#allocation6 + $0xb4] sm:$0xf]
    %v942 = vld [vmem:[#allocation6 + $0xbc] sm:$0xf]
    %v943 = vld [vmem:[#allocation6 + $0xc4] sm:$0xf]
    %v944 = vld [vmem:[#allocation6 + $0xcc] sm:$0xf]
    %v945 = vld [vmem:[#allocation6 + $0xd4] sm:$0xf]
    %v946 = vld [vmem:[#allocation6 + $0xdc] sm:$0xf]
    %v947 = vld [vmem:[#allocation6 + $0xe4] sm:$0xf]
    %v948 = vld [vmem:[#allocation6 + $0xec] sm:$0xf]
    %v949 = vld [vmem:[#allocation6 + $0xf4] sm:$0xf]
    %v950 = vld [vmem:[#allocation6 + $0xfc] sm:$0xf]
    %v951 = vld [vmem:[#allocation7 + $0x16] ss:$0 sm:$0xff]
    %v984 = vunpack.c.l.b16 %v919
    %v985 = vunpack.c.l.b16 %v920
    %v986 = vunpack.c.l.b16 %v921
    %v987 = vunpack.c.l.b16 %v922
    %v988 = vunpack.c.l.b16 %v923
    %v989 = vunpack.c.l.b16 %v924
    %v990 = vunpack.c.l.b16 %v925
    %v991 = vunpack.c.l.b16 %v926
    %v992 = vunpack.c.l.b16 %v927
    %v993 = vunpack.c.l.b16 %v928
    %v994 = vunpack.c.l.b16 %v929
    %v995 = vunpack.c.l.b16 %v930
    %v996 = vunpack.c.l.b16 %v931
    %v997 = vunpack.c.l.b16 %v932
    %v998 = vunpack.c.l.b16 %v933
    %v999 = vunpack.c.l.b16 %v934
    %v1000 = vunpack.c.l.b16 %v935
    %v1001 = vunpack.c.l.b16 %v936
    %v1002 = vunpack.c.l.b16 %v937
    %v1003 = vunpack.c.l.b16 %v938
    %v1004 = vunpack.c.l.b16 %v939
    %v1005 = vunpack.c.l.b16 %v940
    %v1006 = vunpack.c.l.b16 %v941
    %v1007 = vunpack.c.l.b16 %v942
    %v1008 = vunpack.c.l.b16 %v943
    %v1009 = vunpack.c.l.b16 %v944
    %v1010 = vunpack.c.l.b16 %v945
    %v1011 = vunpack.c.l.b16 %v946
    %v1012 = vunpack.c.l.b16 %v947
    %v1013 = vunpack.c.l.b16 %v948
    %v1014 = vunpack.c.l.b16 %v949
    %v1015 = vunpack.c.l.b16 %v950
    %v1016 = vpack.c.b16 %v985, %v984
    %v1017 = vpack.c.b16 %v987, %v986
    %v1018 = vpack.c.b16 %v989, %v988
    %v1019 = vpack.c.b16 %v991, %v990
    %v1020 = vpack.c.b16 %v993, %v992
    %v1021 = vpack.c.b16 %v995, %v994
    %v1022 = vpack.c.b16 %v997, %v996
    %v1023 = vpack.c.b16 %v999, %v998
    %v1024 = vpack.c.b16 %v1001, %v1000
    %v1025 = vpack.c.b16 %v1003, %v1002
    %v1026 = vpack.c.b16 %v1005, %v1004
    %v1027 = vpack.c.b16 %v1007, %v1006
    %v1028 = vpack.c.b16 %v1009, %v1008
    %v1029 = vpack.c.b16 %v1011, %v1010
    %v1030 = vpack.c.b16 %v1013, %v1012
    %v1031 = vpack.c.b16 %v1015, %v1014
    %1048 = vmatpush.bf16.msra.mxu0 %v1023
    %1049 = vmatpush.bf16.msra.mxu0 %v1022
    %1050 = vmatpush.bf16.msra.mxu0 %v1021
    %1051 = vmatpush.bf16.msra.mxu0 %v1020
    %1052 = vmatpush.bf16.msra.mxu0 %v1019
    %1053 = vmatpush.bf16.msra.mxu0 %v1018
    %1054 = vmatpush.bf16.msra.mxu0 %v1017
    %1055 = vmatpush.bf16.msra.mxu0 %v1016
    %1056 = vmatmul.bf16.gmra.mxu0 %v917
    %v1057 = vpop.f32.mrf.mxu0
    %v1058 = vadd.f32 %v951, %v1057
    %v1059 = vpop.f32.mrf.mxu0
    %1060 = vdwg.mxu0
    %1061 = vmatpush.bf16.msra.mxu0 %v1031
    %1062 = vmatpush.bf16.msra.mxu0 %v1030
    %1063 = vmatpush.bf16.msra.mxu0 %v1029
    %1064 = vmatpush.bf16.msra.mxu0 %v1028
    %1065 = vmatpush.bf16.msra.mxu0 %v1027
    %1066 = vmatpush.bf16.msra.mxu0 %v1026
    %1067 = vmatpush.bf16.msra.mxu0 %v1025
    %1068 = vmatpush.bf16.msra.mxu0 %v1024
    %1069 = vmatmul.bf16.gmra.mxu0 %v918
    %v1070 = vpop.f32.mrf.mxu0
    %v1071 = vadd.f32 %v1058, %v1070
    %v1072 = vpop.f32.mrf.mxu0
    %1073 = vdwg.mxu0
    %v1074 = vxor.u32 %v1071, 2147483648
    %v1075 = vmul.f32 %v1074, 1.442695
    %v1076 = vpow.pop %v1075
    %v1077 = vadd.f32 %v1076, 1.0
    %v1078 = vrcp.pop %v1077
    %v1079 = vmul.f32 %v1077, %v1078
    %v1080 = vsub.f32 1.0, %v1079
    %v1081 = vmul.f32 %v1078, %v1080
    %v1082 = vadd.f32 %v1078, %v1081
    %vm1083 = vweird.f32 %v1077
    %vm1084 = vweird.f32 %v1078
    %vm1085 = vmor %vm1083, %vm1084
    %v1086 = vsel %vm1085, %v1078, %v1082
    %v1087 = vand.u32 2147483647, %v1077
    %vm1088 = vcmp.eq.f32.partialorder %v1087, 8.507059e+37
    %v1089 = vand.u32 %v1077, 2147483648
    %v1090 = vor.u32 1.1754944e-38, %v1089
    %v1091 = vsel %vm1088, %v1090, %v1086
    %v1092 = vmul.f32 1.0, %v1091
    %v1093 = vpack.c.bf16 %v717, %v717
    %v1094 = vld [vmem:[#allocation2 + $0x18] sm:$0x3]
    %v1096 = vsel %vm693, %v1093, 0
    %v1099 = vsel %vm674, %v1094, 0
    %1101 = vmatpush.bf16.msra.mxu0 0
    %1102 = vmatpush.bf16.msra.mxu0 0
    %1103 = vmatpush.bf16.msra.mxu0 0
    %1104 = vmatpush.bf16.msra.mxu0 0
    %1105 = vmatpush.bf16.msra.mxu0 0
    %1106 = vmatpush.bf16.msra.mxu0 0
    %1107 = vmatpush.bf16.msra.mxu0 0
    %1108 = vmatpush.bf16.msra.mxu0 %v1099
    %1109 = vmatmul.bf16.gmra.mxu0 %v1096
    %v1110 = vpop.f32.mrf.mxu0
    %v1111 = vadd.f32 0.0, %v1110
    %v1112 = vpop.f32.mrf.mxu0
    %1113 = vdwg.mxu0
    %v1114 = vmul.f32 %v1111, %v1092
    %v1115 = vpack.c.bf16 %v1114, %v1114
    %v1116 = vld [vmem:[#allocation2 + $0x1c] sm:$0xf]
    %v1117 = vld [vmem:[#allocation2 + $0x3c] sm:$0xf]
    %v1118 = vld [vmem:[#allocation2 + $0x5c] sm:$0xf]
    %v1119 = vld [vmem:[#allocation2 + $0x7c] sm:$0xf]
    %v1120 = vld [vmem:[#allocation2 + $0x9c] sm:$0xf]
    %v1121 = vld [vmem:[#allocation2 + $0xbc] sm:$0xf]
    %v1122 = vld [vmem:[#allocation2 + $0xdc] sm:$0xf]
    %v1123 = vld [vmem:[#allocation2 + $0xfc] sm:$0xf]
    %v1132 = vunpack.c.l.b16 %v1116
    %v1133 = vunpack.c.l.b16 %v1117
    %v1134 = vunpack.c.l.b16 %v1118
    %v1135 = vunpack.c.l.b16 %v1119
    %v1136 = vunpack.c.l.b16 %v1120
    %v1137 = vunpack.c.l.b16 %v1121
    %v1138 = vunpack.c.l.b16 %v1122
    %v1139 = vunpack.c.l.b16 %v1123
    %v1140 = vpack.c.b16 %v1133, %v1132
    %v1141 = vpack.c.b16 %v1135, %v1134
    %v1142 = vpack.c.b16 %v1137, %v1136
    %v1143 = vpack.c.b16 %v1139, %v1138
    %vm1148 = vcmask 523264
    %v1150 = vsel %vm1148, %v1115, 0
    %1152 = vmatpush.bf16.msra.mxu0 0
    %1153 = vmatpush.bf16.msra.mxu0 0
    %1154 = vmatpush.bf16.msra.mxu0 0
    %1155 = vmatpush.bf16.msra.mxu0 0
    %1156 = vmatpush.bf16.msra.mxu0 %v1143
    %1157 = vmatpush.bf16.msra.mxu0 %v1142
    %1158 = vmatpush.bf16.msra.mxu0 %v1141
    %1159 = vmatpush.bf16.msra.mxu0 %v1140
    %1160 = vmatmul.bf16.gmra.mxu0 %v1150
    %v1161 = vpop.f32.mrf.mxu0
    %v1162 = vadd.f32 0.0, %v1161
    %v1163 = vpop.f32.mrf.mxu0
    %1164 = vdwg.mxu0
    %1166 = vrot.lane.b32.xlu0 %v572, 16
    %v1167 = vpop.permute.xlu0 %1166
    %1170 = vrot.lane.b32.xlu0 %v717, 24
    %v1171 = vpop.permute.xlu0 %1170
    %1174 = vrot.lane.b32.xlu0 %v1092, 28
    %v1175 = vpop.permute.xlu0 %1174
    %v1177 = vsel %vm98, %v1162, %v1167
    %v1178 = vsel %vm670, %v1177, %v1167
    %vm1179 = vcmask 195584
    %v1180 = vsel %vm1179, %v1178, %v1171
    %vm1181 = vcmask 228352
    %v1182 = vsel %vm1181, %v1180, %v1175
    %vm1183 = vcmask 752640
    %v1184 = vsel %vm1183, %v1182, 0.0
    %1185 = vst [vmem:[%s5] sm:$0xff] %v1184
    // Predicated region
    $region38: #{dvdiffusion_forward.1} parent=1 // pred_check
      _
    $region39: #{dvdiffusion_forward.1} parent=1 // pred_check_branch
      %1187 = sbr.rel (0) target = $region41
    $region40: #{dvdiffusion_forward.1} parent=1 // pred_region
      _
    $region41: #{dvdiffusion_forward.1} parent=1 // pred_fallthru
      _
    // Predicated region
    $region42: #{dvdiffusion_forward.1} parent=1 // pred_check
      _
    $region43: #{dvdiffusion_forward.1} parent=1 // pred_check_branch
      %1189 = sbr.rel (0) target = $region45
    $region44: #{dvdiffusion_forward.1} parent=1 // pred_region
      _
    $region45: #{dvdiffusion_forward.1} parent=1 // pred_fallthru
      _
    %1190 = vsyncpa [#allocation3], 1
    %1191 = vsyncpa [#allocation5], 1
    %1192 = vsyncpa [#allocation8], 1

</llo_original>
